<compile_context>
chip_gen: v5e
topology: v5e:2x2
jax: 0.10.0
libtpu: 0.0.40
codegen_flags: <defaults>
</compile_context>

<pallas_src>
import functools

import jax
import jax.numpy as jnp
from jax import lax
from jax.experimental import pallas as pl
from jax.experimental.pallas import tpu as pltpu


def autopad(k, p=None, d=1):
    """Pad to 'same' shape outputs (mirror of the PyTorch helper)."""
    if d > 1:
        k = d * (k - 1) + 1 if isinstance(k, int) else [d * (x - 1) + 1 for x in k]
    if p is None:
        p = k // 2 if isinstance(k, int) else [x // 2 for x in k]
    return p


def _round_up(a, b):
    return (a + b - 1) // b * b


def _cdiv(a, b):
    return -(-a // b)


# -----------------------------------------------------------------------------
# Pallas kernel: one (tm, tn) output tile of  SiLU( (X @ W) * scale + bias )
# Grid = (M tiles, Cout tiles, K reduction); acc_ref is an f32 VMEM accumulator.
# -----------------------------------------------------------------------------
def _matmul_bn_silu_kernel(x_ref, w_ref, scale_ref, bias_ref, o_ref, acc_ref):
    # x_ref:     (tm, tk)  bf16   im2col rows
    # w_ref:     (tk, tn)  bf16   conv weights (no BN folding)
    # scale_ref: (1,  tn)  f32    gamma / sqrt(var + eps)
    # bias_ref:  (1,  tn)  f32    beta - mean * scale
    # o_ref:     (tm, tn)  bf16   output tile
    # acc_ref:   (tm, tn)  f32    VMEM scratch accumulator
    @pl.when(pl.program_id(2) == 0)
    def _init():
        acc_ref[...] = jnp.zeros_like(acc_ref)

    acc_ref[...] += jnp.dot(
        x_ref[...], w_ref[...], preferred_element_type=jnp.float32
    )

    @pl.when(pl.program_id(2) == pl.num_programs(2) - 1)
    def _finalize():
        # BN (inference) applied in f32, once per output tile.
        y = acc_ref[...] * scale_ref[...] + bias_ref[...]
        # Exact SiLU: epilogue runs once per tile, EUP cost is fully hidden.
        y = y * (1.0 / (1.0 + jnp.exp(-y)))
        o_ref[...] = y.astype(o_ref.dtype)


# -----------------------------------------------------------------------------
# Tile-size selection (lane-dense, (8,128)-aligned, minimal pad waste)
# -----------------------------------------------------------------------------
def _pick_tiles(M, Cout, Kdim):
    # tm: as big as possible, but keep >=2 M-tiles for v7x's two TensorCores
    # when M is moderate.
    if M >= 1024:
        tm = 512
    elif M >= 512:
        tm = 256
    else:
        tm = _round_up(M, 8)

    # tn: widest of {512, 256, 128} that does not increase the padded Cout.
    n128 = _round_up(Cout, 128)
    tn = 128
    for cand in (256, 512):
        if _round_up(n128, cand) <= _round_up(n128, tn):
            tn = cand

    # tk: single K step when K fits in <=2048, else an even 128-aligned split.
    k128 = _round_up(Kdim, 128)
    if k128 <= 2048:
        tk = k128
    else:
        n_k = _cdiv(Kdim, 2048)
        tk = _round_up(_cdiv(Kdim, n_k), 128)
    return tm, tn, tk


# -----------------------------------------------------------------------------
# Wrapper: NCHW glue (pad, im2col, tile padding) + pallas_call
# -----------------------------------------------------------------------------
def conv_forward(x_nchw, w_oihw, gamma, beta, run_mean, run_var,
                 *, k=3, s=1, p=None, g=1, d=1, eps=1e-5,
                 out_dtype=jnp.bfloat16):
    """Forward pass of `Conv` (conv + BN(eval) + SiLU).  groups=1 only."""
    if g != 1:
        raise NotImplementedError("conv_forward: only groups=1 is supported")

    N, Cin, H, W = x_nchw.shape
    Cout = w_oihw.shape[0]
    pad = autopad(k, p, d)

    H_out = (H + 2 * pad - d * (k - 1) - 1) // s + 1
    W_out = (W + 2 * pad - d * (k - 1) - 1) // s + 1
    M = N * H_out * W_out
    Kdim = k * k * Cin

    # ---- plain-JAX glue: NCHW -> bf16 padded NHWC -> im2col (M, k*k*Cin) ----
    # bf16 *before* im2col halves the HBM traffic of the replicated copy.
    # TODO(synk): avoid materializing the k*k-replicated im2col copy in HBM by
    # keeping the padded NHWC input in pl.ANY and gathering halo windows
    # inside the kernel (per-tap grid axis / manual halo DMA).
    x_nhwc = jnp.transpose(x_nchw, (0, 2, 3, 1)).astype(jnp.bfloat16)
    xp = jnp.pad(x_nhwc, ((0, 0), (pad, pad), (pad, pad), (0, 0)))
    cols = []
    for kh in range(k):
        for kw in range(k):
            h0, w0 = kh * d, kw * d
            tap = xp[:, h0:h0 + (H_out - 1) * s + 1:s,
                        w0:w0 + (W_out - 1) * s + 1:s, :]
            cols.append(tap.reshape(M, Cin))
    x2d = jnp.concatenate(cols, axis=1)                        # (M, Kdim) bf16

    # Weights OIHW -> (Kdim, Cout), matching the (tap, Cin) ordering above.
    w2d = jnp.transpose(w_oihw, (2, 3, 1, 0)).reshape(Kdim, Cout)
    w2d = w2d.astype(jnp.bfloat16)

    # BN (inference) affine, applied in f32 inside the kernel epilogue.
    scale = (gamma / jnp.sqrt(run_var + eps)).astype(jnp.float32)
    bias = (beta - run_mean * (gamma / jnp.sqrt(run_var + eps))).astype(jnp.float32)

    # ---- tiling ----
    tm, tn, tk = _pick_tiles(M, Cout, Kdim)
    Mp = _round_up(M, tm)
    Np = _round_up(Cout, tn)
    Kp = _round_up(Kdim, tk)

    x2d = jnp.pad(x2d, ((0, Mp - M), (0, Kp - Kdim)))
    w2d = jnp.pad(w2d, ((0, Kp - Kdim), (0, Np - Cout)))
    scale2d = jnp.pad(scale, (0, Np - Cout)).reshape(1, Np)
    bias2d = jnp.pad(bias, (0, Np - Cout)).reshape(1, Np)

    # ---- VMEM budget for the chosen tiles (safe on v7x's 64 MiB) ----
    out_bytes = jnp.dtype(out_dtype).itemsize
    vmem_needed = (2 * (tm * tk + tk * tn) * 2     # double-buffered x, w (bf16)
                   + 2 * tm * tn * out_bytes        # double-buffered out tile
                   + tm * tn * 4                    # f32 accumulator scratch
                   + 4 * tn * 4)                    # scale + bias tiles
    vmem_limit = min(max(32 << 20, int(vmem_needed * 1.5) + (4 << 20)), 48 << 20)

    grid = (Mp // tm, Np // tn, Kp // tk)
    out = pl.pallas_call(
        _matmul_bn_silu_kernel,
        out_shape=jax.ShapeDtypeStruct((Mp, Np), out_dtype),
        grid_spec=pltpu.PrefetchScalarGridSpec(
            num_scalar_prefetch=0,
            grid=grid,
            in_specs=[
                pl.BlockSpec((tm, tk), lambda i, j, kk: (i, kk)),   # x tiles
                pl.BlockSpec((tk, tn), lambda i, j, kk: (kk, j)),   # w tiles
                pl.BlockSpec((1, tn), lambda i, j, kk: (0, j)),     # BN scale
                pl.BlockSpec((1, tn), lambda i, j, kk: (0, j)),     # BN bias
            ],
            out_specs=pl.BlockSpec((tm, tn), lambda i, j, kk: (i, j)),
            scratch_shapes=[pltpu.VMEM((tm, tn), jnp.float32)],
        ),
        compiler_params=pltpu.CompilerParams(
            dimension_semantics=("parallel", "parallel", "arbitrary"),
            vmem_limit_bytes=vmem_limit,
        ),
    )(x2d, w2d, scale2d, bias2d)

    # (Mp, Np) -> strip pad -> NHWC -> NCHW (module semantics).
    # TODO(synk): keep NHWC (and bf16) end-to-end across layers and transpose
    # only at network boundaries to avoid this extra HBM pass per layer.
    out = out[:M, :Cout].reshape(N, H_out, W_out, Cout)
    return jnp.transpose(out, (0, 3, 1, 2))


# -----------------------------------------------------------------------------
# Pure-JAX reference (for correctness check)
# -----------------------------------------------------------------------------
def conv_forward_ref(x, w, gamma, beta, run_mean, run_var,
                     *, k=3, s=1, p=None, d=1, eps=1e-5):
    pad = autopad(k, p, d)
    y = lax.conv_general_dilated(
        x, w, window_strides=(s, s), padding=[(pad, pad), (pad, pad)],
        rhs_dilation=(d, d), dimension_numbers=("NCHW", "OIHW", "NCHW"))
    scale = gamma / jnp.sqrt(run_var + eps)
    bias = beta - run_mean * scale
    y = y * scale[None, :, None, None] + bias[None, :, None, None]
    return y * jax.nn.sigmoid(y)


if __name__ == "__main__":
    # Small shapes consistent with Conv(c_in=4, c_out=8, k=3, s=1)
    N, Cin, H, W = 2, 4, 16, 16
    Cout, K, S, D = 8, 3, 1, 1

    key = jax.random.PRNGKey(0)
    kx, kw, kg, kb, km, kv = jax.random.split(key, 6)

    x = jax.random.normal(kx, (N, Cin, H, W), jnp.float32)
    w = jax.random.normal(kw, (Cout, Cin, K, K), jnp.float32) * 0.1
    gamma = 1.0 + 0.1 * jax.random.normal(kg, (Cout,), jnp.float32)
    beta = 0.1 * jax.random.normal(kb, (Cout,), jnp.float32)
    run_mean = 0.1 * jax.random.normal(km, (Cout,), jnp.float32)
    run_var = jax.random.uniform(kv, (Cout,), jnp.float32, 0.5, 1.5)

    fwd = jax.jit(functools.partial(conv_forward, k=K, s=S, d=D))
    out = jax.block_until_ready(fwd(x, w, gamma, beta, run_mean, run_var))

    ref = conv_forward_ref(x, w, gamma, beta, run_mean, run_var, k=K, s=S, d=D)
    assert out.shape == (N, Cout, H, W), out.shape
    # bf16 MXU operands + bf16 output -> relaxed tolerance vs f32 reference.
    out_f32 = out.astype(jnp.float32)
    max_err = float(jnp.max(jnp.abs(out_f32 - ref)))
    assert jnp.allclose(out_f32, ref, atol=5e-2, rtol=5e-2), max_err

    print("KERNEL_OK")
</pallas_src>

<mosaic_0001>
module attributes {stable_mosaic.version = 11 : i64} {
  func.func @_matmul_bn_silu_kernel(%arg0: i32, %arg1: i32, %arg2: i32, %arg3: memref<256x128xbf16, #tpu.memory_space<vmem>>, %arg4: memref<128x128xbf16, #tpu.memory_space<vmem>>, %arg5: memref<1x128xf32, #tpu.memory_space<vmem>>, %arg6: memref<1x128xf32, #tpu.memory_space<vmem>>, %arg7: memref<256x128xbf16, #tpu.memory_space<vmem>>, %arg8: memref<256x128xf32, #tpu.memory_space<vmem>>) attributes {dimension_semantics = [#tpu.dimension_semantics<parallel>, #tpu.dimension_semantics<parallel>, #tpu.dimension_semantics<arbitrary>], iteration_bounds = array<i64: 2, 1, 1>, scalar_prefetch = 0 : i64, scratch_operands = 1 : i64, tpu.core_type = #tpu.core_type<tc>, window_params = [{transform_indices = @transform_0, window_bounds = array<i64: 256, 128>}, {transform_indices = @transform_1, window_bounds = array<i64: 128, 128>}, {transform_indices = @transform_2, window_bounds = array<i64: 1, 128>}, {transform_indices = @transform_3, window_bounds = array<i64: 1, 128>}, {transform_indices = @transform_4, window_bounds = array<i64: 256, 128>}]} {
    %c0_i32 = arith.constant 0 : i32
    %0 = arith.cmpi eq, %arg2, %c0_i32 : i32
    %1 = arith.extui %0 : i1 to i32
    %c0_i32_0 = arith.constant 0 : i32
    %2 = arith.cmpi ne, %1, %c0_i32_0 : i32
    scf.if %2 {
      %cst_10 = arith.constant 0.000000e+00 : f32
      %12 = vector.broadcast %cst_10 : f32 to vector<256x128xf32>
      %c0_11 = arith.constant 0 : index
      %c0_12 = arith.constant 0 : index
      %13 = vector.load %arg8[%c0_11, %c0_12] : memref<256x128xf32, #tpu.memory_space<vmem>>, vector<256x128xf32>
      tpu.vector_store %arg8[%c0_11, %c0_12], %12 {strides = array<i32>} : memref<256x128xf32, #tpu.memory_space<vmem>>, vector<256x128xf32>,
    } else {
    }
    %c0 = arith.constant 0 : index
    %c0_1 = arith.constant 0 : index
    %3 = vector.load %arg8[%c0, %c0_1] : memref<256x128xf32, #tpu.memory_space<vmem>>, vector<256x128xf32>
    %c0_2 = arith.constant 0 : index
    %c0_3 = arith.constant 0 : index
    %4 = vector.load %arg3[%c0_2, %c0_3] : memref<256x128xbf16, #tpu.memory_space<vmem>>, vector<256x128xbf16>
    %c0_4 = arith.constant 0 : index
    %c0_5 = arith.constant 0 : index
    %5 = vector.load %arg4[%c0_4, %c0_5] : memref<128x128xbf16, #tpu.memory_space<vmem>>, vector<128x128xbf16>
    %cst = arith.constant dense<0.000000e+00> : vector<256x128xf32>
    %6 = tpu.matmul %4, %5, %cst {dimension_numbers = #tpu.dot_dimension_numbers<[1], [0], [0], [1], [0, 0, 1, 1], [], []>} : vector<256x128xbf16>, vector<128x128xbf16>, vector<256x128xf32> -> vector<256x128xf32>
    %7 = arith.addf %3, %6 : vector<256x128xf32>
    %c0_6 = arith.constant 0 : index
    %c0_7 = arith.constant 0 : index
    %8 = vector.load %arg8[%c0_6, %c0_7] : memref<256x128xf32, #tpu.memory_space<vmem>>, vector<256x128xf32>
    tpu.vector_store %arg8[%c0_6, %c0_7], %7 {strides = array<i32>} : memref<256x128xf32, #tpu.memory_space<vmem>>, vector<256x128xf32>,
    %c0_i32_8 = arith.constant 0 : i32
    %9 = arith.cmpi eq, %arg2, %c0_i32_8 : i32
    %10 = arith.extui %9 : i1 to i32
    %c0_i32_9 = arith.constant 0 : i32
    %11 = arith.cmpi ne, %10, %c0_i32_9 : i32
    scf.if %11 {
      %c0_10 = arith.constant 0 : index
      %c0_11 = arith.constant 0 : index
      %12 = vector.load %arg8[%c0_10, %c0_11] : memref<256x128xf32, #tpu.memory_space<vmem>>, vector<256x128xf32>
      %c0_12 = arith.constant 0 : index
      %c0_13 = arith.constant 0 : index
      %13 = vector.load %arg5[%c0_12, %c0_13] : memref<1x128xf32, #tpu.memory_space<vmem>>, vector<1x128xf32>
      %14 = vector.broadcast %13 : vector<1x128xf32> to vector<256x128xf32>
      %15 = arith.mulf %12, %14 : vector<256x128xf32>
      %c0_14 = arith.constant 0 : index
      %c0_15 = arith.constant 0 : index
      %16 = vector.load %arg6[%c0_14, %c0_15] : memref<1x128xf32, #tpu.memory_space<vmem>>, vector<1x128xf32>
      %17 = vector.broadcast %16 : vector<1x128xf32> to vector<256x128xf32>
      %18 = arith.addf %15, %17 : vector<256x128xf32>
      %cst_16 = arith.constant 0.000000e+00 : f32
      %19 = vector.broadcast %cst_16 : f32 to vector<256x128xf32>
      %20 = arith.subf %19, %18 : vector<256x128xf32>
      %21 = math.exp %20 : vector<256x128xf32>
      %cst_17 = arith.constant 1.000000e+00 : f32
      %22 = vector.broadcast %cst_17 : f32 to vector<256x128xf32>
      %23 = arith.addf %22, %21 : vector<256x128xf32>
      %cst_18 = arith.constant 1.000000e+00 : f32
      %24 = vector.broadcast %cst_18 : f32 to vector<256x128xf32>
      %25 = arith.divf %24, %23 : vector<256x128xf32>
      %26 = arith.mulf %18, %25 : vector<256x128xf32>
      %27 = arith.truncf %26 : vector<256x128xf32> to vector<256x128xbf16>
      %c0_19 = arith.constant 0 : index
      %c0_20 = arith.constant 0 : index
      %28 = vector.load %arg7[%c0_19, %c0_20] : memref<256x128xbf16, #tpu.memory_space<vmem>>, vector<256x128xbf16>
      tpu.vector_store %arg7[%c0_19, %c0_20], %27 {strides = array<i32>} : memref<256x128xbf16, #tpu.memory_space<vmem>>, vector<256x128xbf16>,
    } else {
    }
    return
  }
  func.func @transform_0(%arg0: i32, %arg1: i32, %arg2: i32) -> (i32, i32) {
    %c0_i32 = arith.constant 0 : i32
    return %arg0, %arg2 : i32, i32
  }
  func.func @transform_1(%arg0: i32, %arg1: i32, %arg2: i32) -> (i32, i32) {
    %c0_i32 = arith.constant 0 : i32
    return %arg2, %arg1 : i32, i32
  }
  func.func @transform_2(%arg0: i32, %arg1: i32, %arg2: i32) -> (i32, i32) {
    %c0_i32 = arith.constant 0 : i32
    %c0_i32_0 = arith.constant 0 : i32
    return %c0_i32, %arg1 : i32, i32
  }
  func.func @transform_3(%arg0: i32, %arg1: i32, %arg2: i32) -> (i32, i32) {
    %c0_i32 = arith.constant 0 : i32
    %c0_i32_0 = arith.constant 0 : i32
    return %c0_i32, %arg1 : i32, i32
  }
  func.func @transform_4(%arg0: i32, %arg1: i32, %arg2: i32) -> (i32, i32) {
    %c0_i32 = arith.constant 0 : i32
    return %arg0, %arg1 : i32, i32
  }
}

</mosaic_0001>

<llo_original>
// kernel: conv_forward.1
$region0: #{conv_forward.1}
  #allocation0 [shape = 'u32[]', space=smem, size = 0x4, offset = 0x4, fixed_abs, tag = 'smem constant byte address 0x4 - core index']
  #allocation1 [shape = 'u32[72,128]{1,0:T(1,128)}', space=vmem, size = 0x9000, scoped, tag = 'internal scratch']
  #allocation2 [shape = 'f32[256,128]{1,0:T(8,128)}', space=vmem, size = 0x20000, scoped, tag = 'scratch operand']
  %s0 = inlined_call_operand.vmem [shape: bf16[512,128], index: 0, kind: input, shape index: {}]
  %s1 = inlined_call_operand.vmem [shape: bf16[128,128], index: 1, kind: input, shape index: {}]
  %s2 = inlined_call_operand.vmem [shape: f32[1,128], index: 2, kind: input, shape index: {}]
  %s3 = inlined_call_operand.vmem [shape: f32[1,128], index: 3, kind: input, shape index: {}]
  %s4 = inlined_call_operand.vmem [shape: bf16[512,128], index: 4, kind: output, shape index: {}]
  %s5 = sld [smem:[#allocation0]]
  $region57: #{conv_forward.1} parent=0
    _
  %s7 = ssub.s32 1, %s5
  %s8 = scalar_select 0, %s7, %s5
  loop: start=0, step=1, limit=4
  $region2: #{conv_forward.1} parent=0 // loop_pre_header
    _
  $region3: #{conv_forward.1} parent=0 // loop_header
    %s10 = sphi 0, %s14
    %p11 = scmp.ge.s32.totalorder %s10, 4
    %s17 = sphi 0, %s36
    %s18 = sphi 0, %s32
    %s19 = sphi 0, %s28
    %s20 = sphi 0, %s17
    %s21 = sphi 0, %s18
    %s22 = sphi 0, %s19
    %s23 = sphi 0, %s20
    %s24 = sphi 0, %s21
    %s25 = sphi 0, %s22
    %s41 = sphi 0, %s43
    %s44 = sphi 0, %s41
    %s45 = sphi 0, %s44
    %s61 = sphi 0, %s45
    %s69 = sphi 0, %s71
    %s72 = sphi 0, %s69
    %s73 = sphi 0, %s72
    %s89 = sphi 0, %s73
    %s95 = sphi 0, %s97
    %s98 = sphi 0, %s95
    %s99 = sphi 0, %s98
    %s115 = sphi 0, %s99
    %s121 = sphi 0, %s123
    %s124 = sphi 0, %s121
    %s125 = sphi 0, %s124
    %s141 = sphi 0, %s125
    %s149 = sphi 0, %s151
    %s152 = sphi 0, %s149
    %s153 = sphi 0, %s152
    %s169 = sphi 0, %s153
  $region4: #{conv_forward.1} parent=0 // loop_header_branch
    %13 = sbr.rel (%p11) target = $region8
  $region5: #{conv_forward.1} parent=0 // loop_body
    %s15 = ssub.s32 %s10, 1
    %s16 = ssub.s32 %s10, 2
    %s26 = sadd.s32 1, %s19
    %p27 = scmp.ge.s32.totalorder %s26, 1
    %s28 = scalar_select %p27, 0, %s26
    %s29 = sadd.s32 1, %s18
    %s30 = scalar_select %p27, %s29, %s18
    %p31 = scmp.ge.s32.totalorder %s30, 1
    %s32 = scalar_select %p31, 0, %s30
    %s33 = sadd.s32 1, %s17
    %s34 = scalar_select %p31, %s33, %s17
    %p35 = scmp.ge.s32.totalorder %s34, 2
    %s36 = scalar_select %p35, 0, %s34
    %s37 = ssub.s32 %s17, %s36
    %s38 = ssub.s32 %s19, %s28
    %s39 = sor.u32 %s37, %s38
    %p40 = scmp.eq.s32.totalorder %s39, 0
    %s42 = sadd.s32 %s41, 1
    %s43 = scalar_select %p40, %s41, %s42
    %p46 = pneg %p40
    %p47 = scmp.eq.s32.totalorder %s10, 1
    %p48 = por %p46, %p47
    %p49 = scmp.ne.s32.totalorder %s41, %s44
    %p50 = scmp.eq.s32.totalorder %s10, 0
    %p51 = por %p49, %p50
    %p52 = scmp.ne.s32.totalorder %s41, %s44
    %p53 = scmp.eq.s32.totalorder %s15, 1
    %p54 = por %p52, %p53
    %p55 = scmp.ne.s32.totalorder %s44, %s45
    %p56 = scmp.eq.s32.totalorder %s15, 0
    %p57 = por %p55, %p56
    %p58 = scmp.ne.s32.totalorder %s44, %s45
    %p59 = scmp.eq.s32.totalorder %s16, 1
    %p60 = por %p58, %p59
    %p62 = scmp.ne.s32.totalorder %s45, %s61
    %p63 = scmp.eq.s32.totalorder %s16, 0
    %p64 = por %p62, %p63
    %s65 = ssub.s32 %s19, %s28
    %s66 = ssub.s32 %s18, %s32
    %s67 = sor.u32 %s65, %s66
    %p68 = scmp.eq.s32.totalorder %s67, 0
    %s70 = sadd.s32 %s69, 1
    %s71 = scalar_select %p68, %s69, %s70
    %p74 = pneg %p68
    %p75 = scmp.eq.s32.totalorder %s10, 1
    %p76 = por %p74, %p75
    %p77 = scmp.ne.s32.totalorder %s69, %s72
    %p78 = scmp.eq.s32.totalorder %s10, 0
    %p79 = por %p77, %p78
    %p80 = scmp.ne.s32.totalorder %s69, %s72
    %p81 = scmp.eq.s32.totalorder %s15, 1
    %p82 = por %p80, %p81
    %p83 = scmp.ne.s32.totalorder %s72, %s73
    %p84 = scmp.eq.s32.totalorder %s15, 0
    %p85 = por %p83, %p84
    %p86 = scmp.ne.s32.totalorder %s72, %s73
    %p87 = scmp.eq.s32.totalorder %s16, 1
    %p88 = por %p86, %p87
    %p90 = scmp.ne.s32.totalorder %s73, %s89
    %p91 = scmp.eq.s32.totalorder %s16, 0
    %p92 = por %p90, %p91
    %s93 = ssub.s32 %s18, %s32
    %p94 = scmp.eq.s32.totalorder %s93, 0
    %s96 = sadd.s32 %s95, 1
    %s97 = scalar_select %p94, %s95, %s96
    %p100 = pneg %p94
    %p101 = scmp.eq.s32.totalorder %s10, 1
    %p102 = por %p100, %p101
    %p103 = scmp.ne.s32.totalorder %s95, %s98
    %p104 = scmp.eq.s32.totalorder %s10, 0
    %p105 = por %p103, %p104
    %p106 = scmp.ne.s32.totalorder %s95, %s98
    %p107 = scmp.eq.s32.totalorder %s15, 1
    %p108 = por %p106, %p107
    %p109 = scmp.ne.s32.totalorder %s98, %s99
    %p110 = scmp.eq.s32.totalorder %s15, 0
    %p111 = por %p109, %p110
    %p112 = scmp.ne.s32.totalorder %s98, %s99
    %p113 = scmp.eq.s32.totalorder %s16, 1
    %p114 = por %p112, %p113
    %p116 = scmp.ne.s32.totalorder %s99, %s115
    %p117 = scmp.eq.s32.totalorder %s16, 0
    %p118 = por %p116, %p117
    %s119 = ssub.s32 %s18, %s32
    %p120 = scmp.eq.s32.totalorder %s119, 0
    %s122 = sadd.s32 %s121, 1
    %s123 = scalar_select %p120, %s121, %s122
    %p126 = pneg %p120
    %p127 = scmp.eq.s32.totalorder %s10, 1
    %p128 = por %p126, %p127
    %p129 = scmp.ne.s32.totalorder %s121, %s124
    %p130 = scmp.eq.s32.totalorder %s10, 0
    %p131 = por %p129, %p130
    %p132 = scmp.ne.s32.totalorder %s121, %s124
    %p133 = scmp.eq.s32.totalorder %s15, 1
    %p134 = por %p132, %p133
    %p135 = scmp.ne.s32.totalorder %s124, %s125
    %p136 = scmp.eq.s32.totalorder %s15, 0
    %p137 = por %p135, %p136
    %p138 = scmp.ne.s32.totalorder %s124, %s125
    %p139 = scmp.eq.s32.totalorder %s16, 1
    %p140 = por %p138, %p139
    %p142 = scmp.ne.s32.totalorder %s125, %s141
    %p143 = scmp.eq.s32.totalorder %s16, 0
    %p144 = por %p142, %p143
    %s145 = ssub.s32 %s17, %s36
    %s146 = ssub.s32 %s18, %s32
    %s147 = sor.u32 %s145, %s146
    %p148 = scmp.eq.s32.totalorder %s147, 0
    %s150 = sadd.s32 %s149, 1
    %s151 = scalar_select %p148, %s149, %s150
    %p154 = pneg %p148
    %p155 = scmp.eq.s32.totalorder %s10, 1
    %p156 = por %p154, %p155
    %p157 = scmp.ne.s32.totalorder %s149, %s152
    %p158 = scmp.eq.s32.totalorder %s10, 0
    %p159 = por %p157, %p158
    %p160 = scmp.ne.s32.totalorder %s149, %s152
    %p161 = scmp.eq.s32.totalorder %s15, 1
    %p162 = por %p160, %p161
    %p163 = scmp.ne.s32.totalorder %s152, %s153
    %p164 = scmp.eq.s32.totalorder %s15, 0
    %p165 = por %p163, %p164
    %p166 = scmp.ne.s32.totalorder %s152, %s153
    %p167 = scmp.eq.s32.totalorder %s16, 1
    %p168 = por %p166, %p167
    %p170 = scmp.ne.s32.totalorder %s153, %s169
    %p171 = scmp.eq.s32.totalorder %s16, 0
    %p172 = por %p170, %p171
    %p173 = scmp.le.s32.totalorder 1, %s10
    %p174 = scmp.lt.s32.totalorder %s10, 3
    %p175 = pnand %p173, %p174
    %p176 = pneg %p175
    // Predicated region
    $region9: #{conv_forward.1} parent=5 // pred_check
      _
    $region10: #{conv_forward.1} parent=5 // pred_check_branch
      %178 = sbr.rel (%p175) target = $region12
    $region11: #{conv_forward.1} parent=5 // pred_region
      %s179 = ssub.s32 %s10, 1
      // Predicated region
      $region13: #{conv_forward.1} parent=11 // pred_check
        %p180 = pneg %p85
      $region14: #{conv_forward.1} parent=11 // pred_check_branch
        %182 = sbr.rel (%p180) target = $region16
      $region15: #{conv_forward.1} parent=11 // pred_region
        %s183 = smul.u32 16, %s22
        %p184 = scmp.lt.s32.totalorder %s183, 15
        %s185 = scalar_select %p184, %s183, 15
        %p186 = scmp.lt.s32.totalorder %s21, 0
        %s187 = scalar_select %p186, %s21, 0
        %s188 = sadd.s32 %s187, %s185
        %s189 = smul.addr %s188, 4
        %s190 = scalar_lea.vmem %s1, %s189
        %s191 = smul.u32 16, %s22
      $region16: #{conv_forward.1} parent=11 // pred_fallthru
        _
      // Predicated region
      $region17: #{conv_forward.1} parent=11 // pred_check
        %p192 = pneg %p111
      $region18: #{conv_forward.1} parent=11 // pred_check_branch
        %194 = sbr.rel (%p192) target = $region20
      $region19: #{conv_forward.1} parent=11 // pred_region
        %p195 = scmp.lt.s32.totalorder %s21, 0
        %s196 = scalar_select %p195, %s21, 0
        %s197 = scalar_lea.vmem %s2, %s196
      $region20: #{conv_forward.1} parent=11 // pred_fallthru
        _
      // Predicated region
      $region21: #{conv_forward.1} parent=11 // pred_check
        %p198 = pneg %p137
      $region22: #{conv_forward.1} parent=11 // pred_check_branch
        %200 = sbr.rel (%p198) target = $region24
      $region23: #{conv_forward.1} parent=11 // pred_region
        %p201 = scmp.lt.s32.totalorder %s21, 0
        %s202 = scalar_select %p201, %s21, 0
        %s203 = scalar_lea.vmem %s3, %s202
      $region24: #{conv_forward.1} parent=11 // pred_fallthru
        _
    $region12: #{conv_forward.1} parent=5 // pred_fallthru
      _
    %p204 = scmp.lt.s32.totalorder %s10, 2
    // Predicated region
    $region25: #{conv_forward.1} parent=5 // pred_check
      %p205 = pneg %p204
    $region26: #{conv_forward.1} parent=5 // pred_check_branch
      %207 = sbr.rel (%p205) target = $region28
    $region27: #{conv_forward.1} parent=5 // pred_region
      // Predicated region
      $region29: #{conv_forward.1} parent=27 // pred_check
        %p208 = pneg %p51
      $region30: #{conv_forward.1} parent=27 // pred_check_branch
        %210 = sbr.rel (%p208) target = $region32
      $region31: #{conv_forward.1} parent=27 // pred_region
        %s211 = smul.u32 32, %s17
        %p212 = scmp.lt.s32.totalorder %s211, 63
        %s213 = scalar_select %p212, %s211, 63
        %p214 = scmp.lt.s32.totalorder %s19, 0
        %s215 = scalar_select %p214, %s19, 0
        %s216 = sadd.s32 %s215, %s213
        %s217 = smul.addr %s216, 4
        %s218 = scalar_lea.vmem %s0, %s217
        %s219 = smul.u32 32, %s17
      $region32: #{conv_forward.1} parent=27 // pred_fallthru
        _
    $region28: #{conv_forward.1} parent=5 // pred_fallthru
      _
    %p220 = scmp.le.s32.totalorder 1, %s10
    %p221 = scmp.lt.s32.totalorder %s10, 3
    %p222 = pnand %p220, %p221
    %p223 = pneg %p222
    // Predicated region
    $region33: #{conv_forward.1} parent=5 // pred_check
      _
    $region34: #{conv_forward.1} parent=5 // pred_check_branch
      %225 = sbr.rel (%p222) target = $region36
    $region35: #{conv_forward.1} parent=5 // pred_region
      %s226 = ssub.s32 %s10, 1
      %s227 = smul.u32 32, %s20
      %p228 = scmp.lt.s32.totalorder %s227, 63
      %s229 = scalar_select %p228, %s227, 63
      %p230 = scmp.lt.s32.totalorder %s22, 0
      %s231 = scalar_select %p230, %s22, 0
      %s232 = sadd.s32 %s231, %s229
      %s233 = smul.addr %s232, 4
      %s234 = scalar_lea.vmem %s0, %s233
      %p235 = pneg %p57
      %p236 = pneg %p54
      %s237 = smul.u32 16, %s22
      %p238 = scmp.lt.s32.totalorder %s237, 15
      %s239 = scalar_select %p238, %s237, 15
      %p240 = scmp.lt.s32.totalorder %s21, 0
      %s241 = scalar_select %p240, %s21, 0
      %s242 = sadd.s32 %s241, %s239
      %s243 = smul.addr %s242, 4
      %s244 = scalar_lea.vmem %s1, %s243
      %p245 = pneg %p85
      %p246 = pneg %p82
      %p247 = scmp.lt.s32.totalorder %s21, 0
      %s248 = scalar_select %p247, %s21, 0
      %s249 = scalar_lea.vmem %s2, %s248
      %p250 = pneg %p111
      %p251 = pneg %p108
      %p252 = scmp.lt.s32.totalorder %s21, 0
      %s253 = scalar_select %p252, %s21, 0
      %s254 = scalar_lea.vmem %s3, %s253
      %p255 = pneg %p137
      %p256 = pneg %p134
      %p257 = pneg %p165
      %p258 = pneg %p162
      %s259 = smul.u32 32, %s20
      %p260 = scmp.lt.s32.totalorder %s259, 63
      %s261 = scalar_select %p260, %s259, 63
      %p262 = scmp.lt.s32.totalorder %s21, 0
      %s263 = scalar_select %p262, %s21, 0
      %s264 = sadd.s32 %s263, %s261
      %s265 = smul.addr %s264, 4
      %s266 = scalar_lea.vmem %s4, %s265
      %s267 = smul.u32 32, %s20
      %p268 = scmp.lt.s32.totalorder %s267, 63
      %s269 = scalar_select %p268, %s267, 63
      %p270 = scmp.lt.s32.totalorder %s22, 0
      %s271 = scalar_select %p270, %s22, 0
      %s272 = sadd.s32 %s271, %s269
      %s273 = smul.addr %s272, 4
      %s274 = scalar_lea.vmem %s0, %s273
      %s275 = smul.u32 32, %s20
      %s276 = smul.u32 16, %s22
      %p277 = scmp.lt.s32.totalorder %s276, 15
      %s278 = scalar_select %p277, %s276, 15
      %p279 = scmp.lt.s32.totalorder %s21, 0
      %s280 = scalar_select %p279, %s21, 0
      %s281 = sadd.s32 %s280, %s278
      %s282 = smul.addr %s281, 4
      %s283 = scalar_lea.vmem %s1, %s282
      %s284 = smul.u32 16, %s22
      %p285 = scmp.lt.s32.totalorder %s21, 0
      %s286 = scalar_select %p285, %s21, 0
      %s287 = scalar_lea.vmem %s2, %s286
      %p288 = scmp.lt.s32.totalorder %s21, 0
      %s289 = scalar_select %p288, %s21, 0
      %s290 = scalar_lea.vmem %s3, %s289
      %s291 = smul.u32 32, %s20
      %p292 = scmp.lt.s32.totalorder %s291, 63
      %s293 = scalar_select %p292, %s291, 63
      %p294 = scmp.lt.s32.totalorder %s21, 0
      %s295 = scalar_select %p294, %s21, 0
      %s296 = sadd.s32 %s295, %s293
      %s297 = smul.addr %s296, 4
      %s298 = scalar_lea.vmem %s4, %s297
      %s299 = smul.u32 32, %s20
      %p300 = scmp.eq.s32.totalorder %s22, 0
      // Predicated region
      $region37: #{conv_forward.1} parent=35 // pred_check
        %p301 = pneg %p300
      $region38: #{conv_forward.1} parent=35 // pred_check_branch
        %303 = sbr.rel (%p301) target = $region40
      $region39: #{conv_forward.1} parent=35 // pred_region
        %304 = vst [vmem:[#allocation2] sm:$0xff] 0.0
        %305 = vst [vmem:[#allocation2 + $0x8] sm:$0xff] 0.0
        %306 = vst [vmem:[#allocation2 + $0x10] sm:$0xff] 0.0
        %307 = vst [vmem:[#allocation2 + $0x18] sm:$0xff] 0.0
        %308 = vst [vmem:[#allocation2 + $0x20] sm:$0xff] 0.0
        %309 = vst [vmem:[#allocation2 + $0x28] sm:$0xff] 0.0
        %310 = vst [vmem:[#allocation2 + $0x30] sm:$0xff] 0.0
        %311 = vst [vmem:[#allocation2 + $0x38] sm:$0xff] 0.0
        %312 = vst [vmem:[#allocation2 + $0x40] sm:$0xff] 0.0
        %313 = vst [vmem:[#allocation2 + $0x48] sm:$0xff] 0.0
        %314 = vst [vmem:[#allocation2 + $0x50] sm:$0xff] 0.0
        %315 = vst [vmem:[#allocation2 + $0x58] sm:$0xff] 0.0
        %316 = vst [vmem:[#allocation2 + $0x60] sm:$0xff] 0.0
        %317 = vst [vmem:[#allocation2 + $0x68] sm:$0xff] 0.0
        %318 = vst [vmem:[#allocation2 + $0x70] sm:$0xff] 0.0
        %319 = vst [vmem:[#allocation2 + $0x78] sm:$0xff] 0.0
        %320 = vst [vmem:[#allocation2 + $0x80] sm:$0xff] 0.0
        %321 = vst [vmem:[#allocation2 + $0x88] sm:$0xff] 0.0
        %322 = vst [vmem:[#allocation2 + $0x90] sm:$0xff] 0.0
        %323 = vst [vmem:[#allocation2 + $0x98] sm:$0xff] 0.0
        %324 = vst [vmem:[#allocation2 + $0xa0] sm:$0xff] 0.0
        %325 = vst [vmem:[#allocation2 + $0xa8] sm:$0xff] 0.0
        %326 = vst [vmem:[#allocation2 + $0xb0] sm:$0xff] 0.0
        %327 = vst [vmem:[#allocation2 + $0xb8] sm:$0xff] 0.0
        %328 = vst [vmem:[#allocation2 + $0xc0] sm:$0xff] 0.0
        %329 = vst [vmem:[#allocation2 + $0xc8] sm:$0xff] 0.0
        %330 = vst [vmem:[#allocation2 + $0xd0] sm:$0xff] 0.0
        %331 = vst [vmem:[#allocation2 + $0xd8] sm:$0xff] 0.0
        %332 = vst [vmem:[#allocation2 + $0xe0] sm:$0xff] 0.0
        %333 = vst [vmem:[#allocation2 + $0xe8] sm:$0xff] 0.0
        %334 = vst [vmem:[#allocation2 + $0xf0] sm:$0xff] 0.0
        %335 = vst [vmem:[#allocation2 + $0xf8] sm:$0xff] 0.0
      $region40: #{conv_forward.1} parent=35 // pred_fallthru
        _
      %v336 = vld [vmem:[#allocation2] sm:$0xff]
      %v337 = vld [vmem:[#allocation2 + $0x8] sm:$0xff]
      %v338 = vld [vmem:[#allocation2 + $0x10] sm:$0xff]
      %v339 = vld [vmem:[#allocation2 + $0x18] sm:$0xff]
      %v340 = vld [vmem:[#allocation2 + $0x20] sm:$0xff]
      %v341 = vld [vmem:[#allocation2 + $0x28] sm:$0xff]
      %v342 = vld [vmem:[#allocation2 + $0x30] sm:$0xff]
      %v343 = vld [vmem:[#allocation2 + $0x38] sm:$0xff]
      %v344 = vld [vmem:[#allocation2 + $0x40] sm:$0xff]
      %v345 = vld [vmem:[#allocation2 + $0x48] sm:$0xff]
      %v346 = vld [vmem:[#allocation2 + $0x50] sm:$0xff]
      %v347 = vld [vmem:[#allocation2 + $0x58] sm:$0xff]
      %v348 = vld [vmem:[#allocation2 + $0x60] sm:$0xff]
      %v349 = vld [vmem:[#allocation2 + $0x68] sm:$0xff]
      %v350 = vld [vmem:[#allocation2 + $0x70] sm:$0xff]
      %v351 = vld [vmem:[#allocation2 + $0x78] sm:$0xff]
      %v352 = vld [vmem:[#allocation2 + $0x80] sm:$0xff]
      %v353 = vld [vmem:[#allocation2 + $0x88] sm:$0xff]
      %v354 = vld [vmem:[#allocation2 + $0x90] sm:$0xff]
      %v355 = vld [vmem:[#allocation2 + $0x98] sm:$0xff]
      %v356 = vld [vmem:[#allocation2 + $0xa0] sm:$0xff]
      %v357 = vld [vmem:[#allocation2 + $0xa8] sm:$0xff]
      %v358 = vld [vmem:[#allocation2 + $0xb0] sm:$0xff]
      %v359 = vld [vmem:[#allocation2 + $0xb8] sm:$0xff]
      %v360 = vld [vmem:[#allocation2 + $0xc0] sm:$0xff]
      %v361 = vld [vmem:[#allocation2 + $0xc8] sm:$0xff]
      %v362 = vld [vmem:[#allocation2 + $0xd0] sm:$0xff]
      %v363 = vld [vmem:[#allocation2 + $0xd8] sm:$0xff]
      %v364 = vld [vmem:[#allocation2 + $0xe0] sm:$0xff]
      %v365 = vld [vmem:[#allocation2 + $0xe8] sm:$0xff]
      %v366 = vld [vmem:[#allocation2 + $0xf0] sm:$0xff]
      %v367 = vld [vmem:[#allocation2 + $0xf8] sm:$0xff]
      %v368 = vld [vmem:[%s274] sm:$0xf]
      %v369 = vld [vmem:[%s274 + $0x4] sm:$0xf]
      %v370 = vld [vmem:[%s274 + $0x8] sm:$0xf]
      %v371 = vld [vmem:[%s274 + $0xc] sm:$0xf]
      %v372 = vld [vmem:[%s274 + $0x10] sm:$0xf]
      %v373 = vld [vmem:[%s274 + $0x14] sm:$0xf]
      %v374 = vld [vmem:[%s274 + $0x18] sm:$0xf]
      %v375 = vld [vmem:[%s274 + $0x1c] sm:$0xf]
      %v376 = vld [vmem:[%s274 + $0x20] sm:$0xf]
      %v377 = vld [vmem:[%s274 + $0x24] sm:$0xf]
      %v378 = vld [vmem:[%s274 + $0x28] sm:$0xf]
      %v379 = vld [vmem:[%s274 + $0x2c] sm:$0xf]
      %v380 = vld [vmem:[%s274 + $0x30] sm:$0xf]
      %v381 = vld [vmem:[%s274 + $0x34] sm:$0xf]
      %v382 = vld [vmem:[%s274 + $0x38] sm:$0xf]
      %v383 = vld [vmem:[%s274 + $0x3c] sm:$0xf]
      %v384 = vld [vmem:[%s274 + $0x40] sm:$0xf]
      %v385 = vld [vmem:[%s274 + $0x44] sm:$0xf]
      %v386 = vld [vmem:[%s274 + $0x48] sm:$0xf]
      %v387 = vld [vmem:[%s274 + $0x4c] sm:$0xf]
      %v388 = vld [vmem:[%s274 + $0x50] sm:$0xf]
      %v389 = vld [vmem:[%s274 + $0x54] sm:$0xf]
      %v390 = vld [vmem:[%s274 + $0x58] sm:$0xf]
      %v391 = vld [vmem:[%s274 + $0x5c] sm:$0xf]
      %v392 = vld [vmem:[%s274 + $0x60] sm:$0xf]
      %v393 = vld [vmem:[%s274 + $0x64] sm:$0xf]
      %v394 = vld [vmem:[%s274 + $0x68] sm:$0xf]
      %v395 = vld [vmem:[%s274 + $0x6c] sm:$0xf]
      %v396 = vld [vmem:[%s274 + $0x70] sm:$0xf]
      %v397 = vld [vmem:[%s274 + $0x74] sm:$0xf]
      %v398 = vld [vmem:[%s274 + $0x78] sm:$0xf]
      %v399 = vld [vmem:[%s274 + $0x7c] sm:$0xf]
      %v400 = vld [vmem:[%s283] sm:$0xf]
      %v401 = vld [vmem:[%s283 + $0x4] sm:$0xf]
      %v402 = vld [vmem:[%s283 + $0x8] sm:$0xf]
      %v403 = vld [vmem:[%s283 + $0xc] sm:$0xf]
      %v404 = vld [vmem:[%s283 + $0x10] sm:$0xf]
      %v405 = vld [vmem:[%s283 + $0x14] sm:$0xf]
      %v406 = vld [vmem:[%s283 + $0x18] sm:$0xf]
      %v407 = vld [vmem:[%s283 + $0x1c] sm:$0xf]
      %v408 = vld [vmem:[%s283 + $0x20] sm:$0xf]
      %v409 = vld [vmem:[%s283 + $0x24] sm:$0xf]
      %v410 = vld [vmem:[%s283 + $0x28] sm:$0xf]
      %v411 = vld [vmem:[%s283 + $0x2c] sm:$0xf]
      %v412 = vld [vmem:[%s283 + $0x30] sm:$0xf]
      %v413 = vld [vmem:[%s283 + $0x34] sm:$0xf]
      %v414 = vld [vmem:[%s283 + $0x38] sm:$0xf]
      %v415 = vld [vmem:[%s283 + $0x3c] sm:$0xf]
      %v448 = vunpack.c.l.b16 %v368
      %v449 = vunpack.c.l.b16 %v369
      %v450 = vunpack.c.l.b16 %v370
      %v451 = vunpack.c.l.b16 %v371
      %v452 = vunpack.c.l.b16 %v372
      %v453 = vunpack.c.l.b16 %v373
      %v454 = vunpack.c.l.b16 %v374
      %v455 = vunpack.c.l.b16 %v375
      %v456 = vunpack.c.l.b16 %v376
      %v457 = vunpack.c.l.b16 %v377
      %v458 = vunpack.c.l.b16 %v378
      %v459 = vunpack.c.l.b16 %v379
      %v460 = vunpack.c.l.b16 %v380
      %v461 = vunpack.c.l.b16 %v381
      %v462 = vunpack.c.l.b16 %v382
      %v463 = vunpack.c.l.b16 %v383
      %v464 = vunpack.c.l.b16 %v384
      %v465 = vunpack.c.l.b16 %v385
      %v466 = vunpack.c.l.b16 %v386
      %v467 = vunpack.c.l.b16 %v387
      %v468 = vunpack.c.l.b16 %v388
      %v469 = vunpack.c.l.b16 %v389
      %v470 = vunpack.c.l.b16 %v390
      %v471 = vunpack.c.l.b16 %v391
      %v472 = vunpack.c.l.b16 %v392
      %v473 = vunpack.c.l.b16 %v393
      %v474 = vunpack.c.l.b16 %v394
      %v475 = vunpack.c.l.b16 %v395
      %v476 = vunpack.c.l.b16 %v396
      %v477 = vunpack.c.l.b16 %v397
      %v478 = vunpack.c.l.b16 %v398
      %v479 = vunpack.c.l.b16 %v399
      %v480 = vpack.c.b16 %v449, %v448
      %v481 = vpack.c.b16 %v451, %v450
      %v482 = vpack.c.b16 %v453, %v452
      %v483 = vpack.c.b16 %v455, %v454
      %v484 = vpack.c.b16 %v457, %v456
      %v485 = vpack.c.b16 %v459, %v458
      %v486 = vpack.c.b16 %v461, %v460
      %v487 = vpack.c.b16 %v463, %v462
      %v488 = vpack.c.b16 %v465, %v464
      %v489 = vpack.c.b16 %v467, %v466
      %v490 = vpack.c.b16 %v469, %v468
      %v491 = vpack.c.b16 %v471, %v470
      %v492 = vpack.c.b16 %v473, %v472
      %v493 = vpack.c.b16 %v475, %v474
      %v494 = vpack.c.b16 %v477, %v476
      %v495 = vpack.c.b16 %v479, %v478
      %v528 = vunpack.c.l.b16 %v400
      %v529 = vunpack.c.l.b16 %v401
      %v530 = vunpack.c.l.b16 %v402
      %v531 = vunpack.c.l.b16 %v403
      %v532 = vunpack.c.l.b16 %v404
      %v533 = vunpack.c.l.b16 %v405
      %v534 = vunpack.c.l.b16 %v406
      %v535 = vunpack.c.l.b16 %v407
      %v536 = vunpack.c.l.b16 %v408
      %v537 = vunpack.c.l.b16 %v409
      %v538 = vunpack.c.l.b16 %v410
      %v539 = vunpack.c.l.b16 %v411
      %v540 = vunpack.c.l.b16 %v412
      %v541 = vunpack.c.l.b16 %v413
      %v542 = vunpack.c.l.b16 %v414
      %v543 = vunpack.c.l.b16 %v415
      %v544 = vpack.c.b16 %v529, %v528
      %v545 = vpack.c.b16 %v531, %v530
      %v546 = vpack.c.b16 %v533, %v532
      %v547 = vpack.c.b16 %v535, %v534
      %v548 = vpack.c.b16 %v537, %v536
      %v549 = vpack.c.b16 %v539, %v538
      %v550 = vpack.c.b16 %v541, %v540
      %v551 = vpack.c.b16 %v543, %v542
      %560 = vmatpush.bf16.msra.mxu0 %v551
      %561 = vmatpush.bf16.msra.mxu0 %v550
      %562 = vmatpush.bf16.msra.mxu0 %v549
      %563 = vmatpush.bf16.msra.mxu0 %v548
      %564 = vmatpush.bf16.msra.mxu0 %v547
      %565 = vmatpush.bf16.msra.mxu0 %v546
      %566 = vmatpush.bf16.msra.mxu0 %v545
      %567 = vmatpush.bf16.msra.mxu0 %v544
      %568 = vmatmul.bf16.gmra.mxu0 %v480
      %v569 = vpop.f32.mrf.mxu0
      %v570 = vadd.f32 0.0, %v569
      %v571 = vpop.f32.mrf.mxu0
      %v572 = vadd.f32 0.0, %v571
      %573 = vmatmul.bf16.gmra.mxu0 %v481
      %v574 = vpop.f32.mrf.mxu0
      %v575 = vadd.f32 0.0, %v574
      %v576 = vpop.f32.mrf.mxu0
      %v577 = vadd.f32 0.0, %v576
      %578 = vmatmul.bf16.gmra.mxu0 %v482
      %v579 = vpop.f32.mrf.mxu0
      %v580 = vadd.f32 0.0, %v579
      %v581 = vpop.f32.mrf.mxu0
      %v582 = vadd.f32 0.0, %v581
      %583 = vmatmul.bf16.gmra.mxu0 %v483
      %v584 = vpop.f32.mrf.mxu0
      %v585 = vadd.f32 0.0, %v584
      %v586 = vpop.f32.mrf.mxu0
      %v587 = vadd.f32 0.0, %v586
      %588 = vmatmul.bf16.gmra.mxu0 %v484
      %v589 = vpop.f32.mrf.mxu0
      %v590 = vadd.f32 0.0, %v589
      %v591 = vpop.f32.mrf.mxu0
      %v592 = vadd.f32 0.0, %v591
      %593 = vmatmul.bf16.gmra.mxu0 %v485
      %v594 = vpop.f32.mrf.mxu0
      %v595 = vadd.f32 0.0, %v594
      %v596 = vpop.f32.mrf.mxu0
      %v597 = vadd.f32 0.0, %v596
      %598 = vmatmul.bf16.gmra.mxu0 %v486
      %v599 = vpop.f32.mrf.mxu0
      %v600 = vadd.f32 0.0, %v599
      %v601 = vpop.f32.mrf.mxu0
      %v602 = vadd.f32 0.0, %v601
      %603 = vmatmul.bf16.gmra.mxu0 %v487
      %v604 = vpop.f32.mrf.mxu0
      %v605 = vadd.f32 0.0, %v604
      %v606 = vpop.f32.mrf.mxu0
      %v607 = vadd.f32 0.0, %v606
      %608 = vmatmul.bf16.gmra.mxu0 %v488
      %v609 = vpop.f32.mrf.mxu0
      %v610 = vadd.f32 0.0, %v609
      %v611 = vpop.f32.mrf.mxu0
      %v612 = vadd.f32 0.0, %v611
      %613 = vmatmul.bf16.gmra.mxu0 %v489
      %v614 = vpop.f32.mrf.mxu0
      %v615 = vadd.f32 0.0, %v614
      %v616 = vpop.f32.mrf.mxu0
      %v617 = vadd.f32 0.0, %v616
      %618 = vmatmul.bf16.gmra.mxu0 %v490
      %v619 = vpop.f32.mrf.mxu0
      %v620 = vadd.f32 0.0, %v619
      %v621 = vpop.f32.mrf.mxu0
      %v622 = vadd.f32 0.0, %v621
      %623 = vmatmul.bf16.gmra.mxu0 %v491
      %v624 = vpop.f32.mrf.mxu0
      %v625 = vadd.f32 0.0, %v624
      %v626 = vpop.f32.mrf.mxu0
      %v627 = vadd.f32 0.0, %v626
      %628 = vmatmul.bf16.gmra.mxu0 %v492
      %v629 = vpop.f32.mrf.mxu0
      %v630 = vadd.f32 0.0, %v629
      %v631 = vpop.f32.mrf.mxu0
      %v632 = vadd.f32 0.0, %v631
      %633 = vmatmul.bf16.gmra.mxu0 %v493
      %v634 = vpop.f32.mrf.mxu0
      %v635 = vadd.f32 0.0, %v634
      %v636 = vpop.f32.mrf.mxu0
      %v637 = vadd.f32 0.0, %v636
      %638 = vmatmul.bf16.gmra.mxu0 %v494
      %v639 = vpop.f32.mrf.mxu0
      %v640 = vadd.f32 0.0, %v639
      %v641 = vpop.f32.mrf.mxu0
      %v642 = vadd.f32 0.0, %v641
      %643 = vmatmul.bf16.gmra.mxu0 %v495
      %v644 = vpop.f32.mrf.mxu0
      %v645 = vadd.f32 0.0, %v644
      %v646 = vpop.f32.mrf.mxu0
      %v647 = vadd.f32 0.0, %v646
      %648 = vdwg.mxu0
      %v649 = vadd.f32 %v336, %v570
      %v650 = vadd.f32 %v337, %v572
      %v651 = vadd.f32 %v338, %v575
      %v652 = vadd.f32 %v339, %v577
      %v653 = vadd.f32 %v340, %v580
      %v654 = vadd.f32 %v341, %v582
      %v655 = vadd.f32 %v342, %v585
      %v656 = vadd.f32 %v343, %v587
      %v657 = vadd.f32 %v344, %v590
      %v658 = vadd.f32 %v345, %v592
      %v659 = vadd.f32 %v346, %v595
      %v660 = vadd.f32 %v347, %v597
      %v661 = vadd.f32 %v348, %v600
      %v662 = vadd.f32 %v349, %v602
      %v663 = vadd.f32 %v350, %v605
      %v664 = vadd.f32 %v351, %v607
      %v665 = vadd.f32 %v352, %v610
      %v666 = vadd.f32 %v353, %v612
      %v667 = vadd.f32 %v354, %v615
      %v668 = vadd.f32 %v355, %v617
      %v669 = vadd.f32 %v356, %v620
      %v670 = vadd.f32 %v357, %v622
      %v671 = vadd.f32 %v358, %v625
      %v672 = vadd.f32 %v359, %v627
      %v673 = vadd.f32 %v360, %v630
      %v674 = vadd.f32 %v361, %v632
      %v675 = vadd.f32 %v362, %v635
      %v676 = vadd.f32 %v363, %v637
      %v677 = vadd.f32 %v364, %v640
      %v678 = vadd.f32 %v365, %v642
      %v679 = vadd.f32 %v366, %v645
      %v680 = vadd.f32 %v367, %v647
      %681 = vst [vmem:[#allocation2] sm:$0xff] %v649
      %682 = vst [vmem:[#allocation2 + $0x8] sm:$0xff] %v650
      %683 = vst [vmem:[#allocation2 + $0x10] sm:$0xff] %v651
      %684 = vst [vmem:[#allocation2 + $0x18] sm:$0xff] %v652
      %685 = vst [vmem:[#allocation2 + $0x20] sm:$0xff] %v653
      %686 = vst [vmem:[#allocation2 + $0x28] sm:$0xff] %v654
      %687 = vst [vmem:[#allocation2 + $0x30] sm:$0xff] %v655
      %688 = vst [vmem:[#allocation2 + $0x38] sm:$0xff] %v656
      %689 = vst [vmem:[#allocation2 + $0x40] sm:$0xff] %v657
      %690 = vst [vmem:[#allocation2 + $0x48] sm:$0xff] %v658
      %691 = vst [vmem:[#allocation2 + $0x50] sm:$0xff] %v659
      %692 = vst [vmem:[#allocation2 + $0x58] sm:$0xff] %v660
      %693 = vst [vmem:[#allocation2 + $0x60] sm:$0xff] %v661
      %694 = vst [vmem:[#allocation2 + $0x68] sm:$0xff] %v662
      %695 = vst [vmem:[#allocation2 + $0x70] sm:$0xff] %v663
      %696 = vst [vmem:[#allocation2 + $0x78] sm:$0xff] %v664
      %697 = vst [vmem:[#allocation2 + $0x80] sm:$0xff] %v665
      %698 = vst [vmem:[#allocation2 + $0x88] sm:$0xff] %v666
      %699 = vst [vmem:[#allocation2 + $0x90] sm:$0xff] %v667
      %700 = vst [vmem:[#allocation2 + $0x98] sm:$0xff] %v668
      %701 = vst [vmem:[#allocation2 + $0xa0] sm:$0xff] %v669
      %702 = vst [vmem:[#allocation2 + $0xa8] sm:$0xff] %v670
      %703 = vst [vmem:[#allocation2 + $0xb0] sm:$0xff] %v671
      %704 = vst [vmem:[#allocation2 + $0xb8] sm:$0xff] %v672
      %705 = vst [vmem:[#allocation2 + $0xc0] sm:$0xff] %v673
      %706 = vst [vmem:[#allocation2 + $0xc8] sm:$0xff] %v674
      %707 = vst [vmem:[#allocation2 + $0xd0] sm:$0xff] %v675
      %708 = vst [vmem:[#allocation2 + $0xd8] sm:$0xff] %v676
      %709 = vst [vmem:[#allocation2 + $0xe0] sm:$0xff] %v677
      %710 = vst [vmem:[#allocation2 + $0xe8] sm:$0xff] %v678
      %711 = vst [vmem:[#allocation2 + $0xf0] sm:$0xff] %v679
      %712 = vst [vmem:[#allocation2 + $0xf8] sm:$0xff] %v680
      // Predicated region
      $region41: #{conv_forward.1} parent=35 // pred_check
        %p713 = pneg %p300
      $region42: #{conv_forward.1} parent=35 // pred_check_branch
        %715 = sbr.rel (%p713) target = $region44
      $region43: #{conv_forward.1} parent=35 // pred_region
        %v716 = vld [vmem:[#allocation2] sm:$0xff]
        %v717 = vld [vmem:[#allocation2 + $0x8] sm:$0xff]
        %v718 = vld [vmem:[#allocation2 + $0x10] sm:$0xff]
        %v719 = vld [vmem:[#allocation2 + $0x18] sm:$0xff]
        %v720 = vld [vmem:[#allocation2 + $0x20] sm:$0xff]
        %v721 = vld [vmem:[#allocation2 + $0x28] sm:$0xff]
        %v722 = vld [vmem:[#allocation2 + $0x30] sm:$0xff]
        %v723 = vld [vmem:[#allocation2 + $0x38] sm:$0xff]
        %v724 = vld [vmem:[#allocation2 + $0x40] sm:$0xff]
        %v725 = vld [vmem:[#allocation2 + $0x48] sm:$0xff]
        %v726 = vld [vmem:[#allocation2 + $0x50] sm:$0xff]
        %v727 = vld [vmem:[#allocation2 + $0x58] sm:$0xff]
        %v728 = vld [vmem:[#allocation2 + $0x60] sm:$0xff]
        %v729 = vld [vmem:[#allocation2 + $0x68] sm:$0xff]
        %v730 = vld [vmem:[#allocation2 + $0x70] sm:$0xff]
        %v731 = vld [vmem:[#allocation2 + $0x78] sm:$0xff]
        %v732 = vld [vmem:[#allocation2 + $0x80] sm:$0xff]
        %v733 = vld [vmem:[#allocation2 + $0x88] sm:$0xff]
        %v734 = vld [vmem:[#allocation2 + $0x90] sm:$0xff]
        %v735 = vld [vmem:[#allocation2 + $0x98] sm:$0xff]
        %v736 = vld [vmem:[#allocation2 + $0xa0] sm:$0xff]
        %v737 = vld [vmem:[#allocation2 + $0xa8] sm:$0xff]
        %v738 = vld [vmem:[#allocation2 + $0xb0] sm:$0xff]
        %v739 = vld [vmem:[#allocation2 + $0xb8] sm:$0xff]
        %v740 = vld [vmem:[#allocation2 + $0xc0] sm:$0xff]
        %v741 = vld [vmem:[#allocation2 + $0xc8] sm:$0xff]
        %v742 = vld [vmem:[#allocation2 + $0xd0] sm:$0xff]
        %v743 = vld [vmem:[#allocation2 + $0xd8] sm:$0xff]
        %v744 = vld [vmem:[#allocation2 + $0xe0] sm:$0xff]
        %v745 = vld [vmem:[#allocation2 + $0xe8] sm:$0xff]
        %v746 = vld [vmem:[#allocation2 + $0xf0] sm:$0xff]
        %v747 = vld [vmem:[#allocation2 + $0xf8] sm:$0xff]
        %v748 = vld [vmem:[%s287] sm:$0x1]
        %v750 = vperm.slane %v748, 0
        %v752 = vmul.f32 %v716, %v750
        %v753 = vmul.f32 %v717, %v750
        %v754 = vmul.f32 %v718, %v750
        %v755 = vmul.f32 %v719, %v750
        %v756 = vmul.f32 %v720, %v750
        %v757 = vmul.f32 %v721, %v750
        %v758 = vmul.f32 %v722, %v750
        %v759 = vmul.f32 %v723, %v750
        %v760 = vmul.f32 %v724, %v750
        %v761 = vmul.f32 %v725, %v750
        %v762 = vmul.f32 %v726, %v750
        %v763 = vmul.f32 %v727, %v750
        %v764 = vmul.f32 %v728, %v750
        %v765 = vmul.f32 %v729, %v750
        %v766 = vmul.f32 %v730, %v750
        %v767 = vmul.f32 %v731, %v750
        %v768 = vmul.f32 %v732, %v750
        %v769 = vmul.f32 %v733, %v750
        %v770 = vmul.f32 %v734, %v750
        %v771 = vmul.f32 %v735, %v750
        %v772 = vmul.f32 %v736, %v750
        %v773 = vmul.f32 %v737, %v750
        %v774 = vmul.f32 %v738, %v750
        %v775 = vmul.f32 %v739, %v750
        %v776 = vmul.f32 %v740, %v750
        %v777 = vmul.f32 %v741, %v750
        %v778 = vmul.f32 %v742, %v750
        %v779 = vmul.f32 %v743, %v750
        %v780 = vmul.f32 %v744, %v750
        %v781 = vmul.f32 %v745, %v750
        %v782 = vmul.f32 %v746, %v750
        %v783 = vmul.f32 %v747, %v750
        %v784 = vld [vmem:[%s290] sm:$0x1]
        %v786 = vperm.slane %v784, 0
        %v788 = vadd.f32 %v752, %v786
        %v789 = vadd.f32 %v753, %v786
        %v790 = vadd.f32 %v754, %v786
        %v791 = vadd.f32 %v755, %v786
        %v792 = vadd.f32 %v756, %v786
        %v793 = vadd.f32 %v757, %v786
        %v794 = vadd.f32 %v758, %v786
        %v795 = vadd.f32 %v759, %v786
        %v796 = vadd.f32 %v760, %v786
        %v797 = vadd.f32 %v761, %v786
        %v798 = vadd.f32 %v762, %v786
        %v799 = vadd.f32 %v763, %v786
        %v800 = vadd.f32 %v764, %v786
        %v801 = vadd.f32 %v765, %v786
        %v802 = vadd.f32 %v766, %v786
        %v803 = vadd.f32 %v767, %v786
        %v804 = vadd.f32 %v768, %v786
        %v805 = vadd.f32 %v769, %v786
        %v806 = vadd.f32 %v770, %v786
        %v807 = vadd.f32 %v771, %v786
        %v808 = vadd.f32 %v772, %v786
        %v809 = vadd.f32 %v773, %v786
        %v810 = vadd.f32 %v774, %v786
        %v811 = vadd.f32 %v775, %v786
        %v812 = vadd.f32 %v776, %v786
        %v813 = vadd.f32 %v777, %v786
        %v814 = vadd.f32 %v778, %v786
        %v815 = vadd.f32 %v779, %v786
        %v816 = vadd.f32 %v780, %v786
        %v817 = vadd.f32 %v781, %v786
        %v818 = vadd.f32 %v782, %v786
        %v819 = vadd.f32 %v783, %v786
        %v820 = vsub.f32 0.0, %v788
        %v821 = vsub.f32 0.0, %v789
        %v822 = vsub.f32 0.0, %v790
        %v823 = vsub.f32 0.0, %v791
        %v824 = vsub.f32 0.0, %v792
        %v825 = vsub.f32 0.0, %v793
        %v826 = vsub.f32 0.0, %v794
        %v827 = vsub.f32 0.0, %v795
        %v828 = vsub.f32 0.0, %v796
        %v829 = vsub.f32 0.0, %v797
        %v830 = vsub.f32 0.0, %v798
        %v831 = vsub.f32 0.0, %v799
        %v832 = vsub.f32 0.0, %v800
        %v833 = vsub.f32 0.0, %v801
        %v834 = vsub.f32 0.0, %v802
        %v835 = vsub.f32 0.0, %v803
        %v836 = vsub.f32 0.0, %v804
        %v837 = vsub.f32 0.0, %v805
        %v838 = vsub.f32 0.0, %v806
        %v839 = vsub.f32 0.0, %v807
        %v840 = vsub.f32 0.0, %v808
        %v841 = vsub.f32 0.0, %v809
        %v842 = vsub.f32 0.0, %v810
        %v843 = vsub.f32 0.0, %v811
        %v844 = vsub.f32 0.0, %v812
        %v845 = vsub.f32 0.0, %v813
        %v846 = vsub.f32 0.0, %v814
        %v847 = vsub.f32 0.0, %v815
        %v848 = vsub.f32 0.0, %v816
        %v849 = vsub.f32 0.0, %v817
        %v850 = vsub.f32 0.0, %v818
        %v851 = vsub.f32 0.0, %v819
        %v852 = vmul.f32 %v820, 1.442695
        %v853 = vpow.pop %v852
        %v854 = vmul.f32 %v821, 1.442695
        %v855 = vpow.pop %v854
        %v856 = vmul.f32 %v822, 1.442695
        %v857 = vpow.pop %v856
        %v858 = vmul.f32 %v823, 1.442695
        %v859 = vpow.pop %v858
        %v860 = vmul.f32 %v824, 1.442695
        %v861 = vpow.pop %v860
        %v862 = vmul.f32 %v825, 1.442695
        %v863 = vpow.pop %v862
        %v864 = vmul.f32 %v826, 1.442695
        %v865 = vpow.pop %v864
        %v866 = vmul.f32 %v827, 1.442695
        %v867 = vpow.pop %v866
        %v868 = vmul.f32 %v828, 1.442695
        %v869 = vpow.pop %v868
        %v870 = vmul.f32 %v829, 1.442695
        %v871 = vpow.pop %v870
        %v872 = vmul.f32 %v830, 1.442695
        %v873 = vpow.pop %v872
        %v874 = vmul.f32 %v831, 1.442695
        %v875 = vpow.pop %v874
        %v876 = vmul.f32 %v832, 1.442695
        %v877 = vpow.pop %v876
        %v878 = vmul.f32 %v833, 1.442695
        %v879 = vpow.pop %v878
        %v880 = vmul.f32 %v834, 1.442695
        %v881 = vpow.pop %v880
        %v882 = vmul.f32 %v835, 1.442695
        %v883 = vpow.pop %v882
        %v884 = vmul.f32 %v836, 1.442695
        %v885 = vpow.pop %v884
        %v886 = vmul.f32 %v837, 1.442695
        %v887 = vpow.pop %v886
        %v888 = vmul.f32 %v838, 1.442695
        %v889 = vpow.pop %v888
        %v890 = vmul.f32 %v839, 1.442695
        %v891 = vpow.pop %v890
        %v892 = vmul.f32 %v840, 1.442695
        %v893 = vpow.pop %v892
        %v894 = vmul.f32 %v841, 1.442695
        %v895 = vpow.pop %v894
        %v896 = vmul.f32 %v842, 1.442695
        %v897 = vpow.pop %v896
        %v898 = vmul.f32 %v843, 1.442695
        %v899 = vpow.pop %v898
        %v900 = vmul.f32 %v844, 1.442695
        %v901 = vpow.pop %v900
        %v902 = vmul.f32 %v845, 1.442695
        %v903 = vpow.pop %v902
        %v904 = vmul.f32 %v846, 1.442695
        %v905 = vpow.pop %v904
        %v906 = vmul.f32 %v847, 1.442695
        %v907 = vpow.pop %v906
        %v908 = vmul.f32 %v848, 1.442695
        %v909 = vpow.pop %v908
        %v910 = vmul.f32 %v849, 1.442695
        %v911 = vpow.pop %v910
        %v912 = vmul.f32 %v850, 1.442695
        %v913 = vpow.pop %v912
        %v914 = vmul.f32 %v851, 1.442695
        %v915 = vpow.pop %v914
        %v916 = vadd.f32 %v853, 1.0
        %v917 = vadd.f32 %v855, 1.0
        %v918 = vadd.f32 %v857, 1.0
        %v919 = vadd.f32 %v859, 1.0
        %v920 = vadd.f32 %v861, 1.0
        %v921 = vadd.f32 %v863, 1.0
        %v922 = vadd.f32 %v865, 1.0
        %v923 = vadd.f32 %v867, 1.0
        %v924 = vadd.f32 %v869, 1.0
        %v925 = vadd.f32 %v871, 1.0
        %v926 = vadd.f32 %v873, 1.0
        %v927 = vadd.f32 %v875, 1.0
        %v928 = vadd.f32 %v877, 1.0
        %v929 = vadd.f32 %v879, 1.0
        %v930 = vadd.f32 %v881, 1.0
        %v931 = vadd.f32 %v883, 1.0
        %v932 = vadd.f32 %v885, 1.0
        %v933 = vadd.f32 %v887, 1.0
        %v934 = vadd.f32 %v889, 1.0
        %v935 = vadd.f32 %v891, 1.0
        %v936 = vadd.f32 %v893, 1.0
        %v937 = vadd.f32 %v895, 1.0
        %v938 = vadd.f32 %v897, 1.0
        %v939 = vadd.f32 %v899, 1.0
        %v940 = vadd.f32 %v901, 1.0
        %v941 = vadd.f32 %v903, 1.0
        %v942 = vadd.f32 %v905, 1.0
        %v943 = vadd.f32 %v907, 1.0
        %v944 = vadd.f32 %v909, 1.0
        %v945 = vadd.f32 %v911, 1.0
        %v946 = vadd.f32 %v913, 1.0
        %v947 = vadd.f32 %v915, 1.0
        %v948 = vrcp.pop %v916
        %v949 = vmul.f32 %v916, %v948
        %v950 = vsub.f32 1.0, %v949
        %v951 = vmul.f32 %v948, %v950
        %v952 = vadd.f32 %v948, %v951
        %vm953 = vweird.f32 %v916
        %vm954 = vweird.f32 %v948
        %vm955 = vmor %vm953, %vm954
        %v956 = vsel %vm955, %v948, %v952
        %v957 = vand.u32 2147483647, %v916
        %vm958 = vcmp.eq.f32.partialorder %v957, 8.507059e+37
        %v959 = vand.u32 %v916, 2147483648
        %v960 = vor.u32 1.1754944e-38, %v959
        %v961 = vsel %vm958, %v960, %v956
        %v962 = vmul.f32 1.0, %v961
        %v963 = vrcp.pop %v917
        %v964 = vmul.f32 %v917, %v963
        %v965 = vsub.f32 1.0, %v964
        %v966 = vmul.f32 %v963, %v965
        %v967 = vadd.f32 %v963, %v966
        %vm968 = vweird.f32 %v917
        %vm969 = vweird.f32 %v963
        %vm970 = vmor %vm968, %vm969
        %v971 = vsel %vm970, %v963, %v967
        %v972 = vand.u32 2147483647, %v917
        %vm973 = vcmp.eq.f32.partialorder %v972, 8.507059e+37
        %v974 = vand.u32 %v917, 2147483648
        %v975 = vor.u32 1.1754944e-38, %v974
        %v976 = vsel %vm973, %v975, %v971
        %v977 = vmul.f32 1.0, %v976
        %v978 = vrcp.pop %v918
        %v979 = vmul.f32 %v918, %v978
        %v980 = vsub.f32 1.0, %v979
        %v981 = vmul.f32 %v978, %v980
        %v982 = vadd.f32 %v978, %v981
        %vm983 = vweird.f32 %v918
        %vm984 = vweird.f32 %v978
        %vm985 = vmor %vm983, %vm984
        %v986 = vsel %vm985, %v978, %v982
        %v987 = vand.u32 2147483647, %v918
        %vm988 = vcmp.eq.f32.partialorder %v987, 8.507059e+37
        %v989 = vand.u32 %v918, 2147483648
        %v990 = vor.u32 1.1754944e-38, %v989
        %v991 = vsel %vm988, %v990, %v986
        %v992 = vmul.f32 1.0, %v991
        %v993 = vrcp.pop %v919
        %v994 = vmul.f32 %v919, %v993
        %v995 = vsub.f32 1.0, %v994
        %v996 = vmul.f32 %v993, %v995
        %v997 = vadd.f32 %v993, %v996
        %vm998 = vweird.f32 %v919
        %vm999 = vweird.f32 %v993
        %vm1000 = vmor %vm998, %vm999
        %v1001 = vsel %vm1000, %v993, %v997
        %v1002 = vand.u32 2147483647, %v919
        %vm1003 = vcmp.eq.f32.partialorder %v1002, 8.507059e+37
        %v1004 = vand.u32 %v919, 2147483648
        %v1005 = vor.u32 1.1754944e-38, %v1004
        %v1006 = vsel %vm1003, %v1005, %v1001
        %v1007 = vmul.f32 1.0, %v1006
        %v1008 = vrcp.pop %v920
        %v1009 = vmul.f32 %v920, %v1008
        %v1010 = vsub.f32 1.0, %v1009
        %v1011 = vmul.f32 %v1008, %v1010
        %v1012 = vadd.f32 %v1008, %v1011
        %vm1013 = vweird.f32 %v920
        %vm1014 = vweird.f32 %v1008
        %vm1015 = vmor %vm1013, %vm1014
        %v1016 = vsel %vm1015, %v1008, %v1012
        %v1017 = vand.u32 2147483647, %v920
        %vm1018 = vcmp.eq.f32.partialorder %v1017, 8.507059e+37
        %v1019 = vand.u32 %v920, 2147483648
        %v1020 = vor.u32 1.1754944e-38, %v1019
        %v1021 = vsel %vm1018, %v1020, %v1016
        %v1022 = vmul.f32 1.0, %v1021
        %v1023 = vrcp.pop %v921
        %v1024 = vmul.f32 %v921, %v1023
        %v1025 = vsub.f32 1.0, %v1024
        %v1026 = vmul.f32 %v1023, %v1025
        %v1027 = vadd.f32 %v1023, %v1026
        %vm1028 = vweird.f32 %v921
        %vm1029 = vweird.f32 %v1023
        %vm1030 = vmor %vm1028, %vm1029
        %v1031 = vsel %vm1030, %v1023, %v1027
        %v1032 = vand.u32 2147483647, %v921
        %vm1033 = vcmp.eq.f32.partialorder %v1032, 8.507059e+37
        %v1034 = vand.u32 %v921, 2147483648
        %v1035 = vor.u32 1.1754944e-38, %v1034
        %v1036 = vsel %vm1033, %v1035, %v1031
        %v1037 = vmul.f32 1.0, %v1036
        %v1038 = vrcp.pop %v922
        %v1039 = vmul.f32 %v922, %v1038
        %v1040 = vsub.f32 1.0, %v1039
        %v1041 = vmul.f32 %v1038, %v1040
        %v1042 = vadd.f32 %v1038, %v1041
        %vm1043 = vweird.f32 %v922
        %vm1044 = vweird.f32 %v1038
        %vm1045 = vmor %vm1043, %vm1044
        %v1046 = vsel %vm1045, %v1038, %v1042
        %v1047 = vand.u32 2147483647, %v922
        %vm1048 = vcmp.eq.f32.partialorder %v1047, 8.507059e+37
        %v1049 = vand.u32 %v922, 2147483648
        %v1050 = vor.u32 1.1754944e-38, %v1049
        %v1051 = vsel %vm1048, %v1050, %v1046
        %v1052 = vmul.f32 1.0, %v1051
        %v1053 = vrcp.pop %v923
        %v1054 = vmul.f32 %v923, %v1053
        %v1055 = vsub.f32 1.0, %v1054
        %v1056 = vmul.f32 %v1053, %v1055
        %v1057 = vadd.f32 %v1053, %v1056
        %vm1058 = vweird.f32 %v923
        %vm1059 = vweird.f32 %v1053
        %vm1060 = vmor %vm1058, %vm1059
        %v1061 = vsel %vm1060, %v1053, %v1057
        %v1062 = vand.u32 2147483647, %v923
        %vm1063 = vcmp.eq.f32.partialorder %v1062, 8.507059e+37
        %v1064 = vand.u32 %v923, 2147483648
        %v1065 = vor.u32 1.1754944e-38, %v1064
        %v1066 = vsel %vm1063, %v1065, %v1061
        %v1067 = vmul.f32 1.0, %v1066
        %v1068 = vrcp.pop %v924
        %v1069 = vmul.f32 %v924, %v1068
        %v1070 = vsub.f32 1.0, %v1069
        %v1071 = vmul.f32 %v1068, %v1070
        %v1072 = vadd.f32 %v1068, %v1071
        %vm1073 = vweird.f32 %v924
        %vm1074 = vweird.f32 %v1068
        %vm1075 = vmor %vm1073, %vm1074
        %v1076 = vsel %vm1075, %v1068, %v1072
        %v1077 = vand.u32 2147483647, %v924
        %vm1078 = vcmp.eq.f32.partialorder %v1077, 8.507059e+37
        %v1079 = vand.u32 %v924, 2147483648
        %v1080 = vor.u32 1.1754944e-38, %v1079
        %v1081 = vsel %vm1078, %v1080, %v1076
        %v1082 = vmul.f32 1.0, %v1081
        %v1083 = vrcp.pop %v925
        %v1084 = vmul.f32 %v925, %v1083
        %v1085 = vsub.f32 1.0, %v1084
        %v1086 = vmul.f32 %v1083, %v1085
        %v1087 = vadd.f32 %v1083, %v1086
        %vm1088 = vweird.f32 %v925
        %vm1089 = vweird.f32 %v1083
        %vm1090 = vmor %vm1088, %vm1089
        %v1091 = vsel %vm1090, %v1083, %v1087
        %v1092 = vand.u32 2147483647, %v925
        %vm1093 = vcmp.eq.f32.partialorder %v1092, 8.507059e+37
        %v1094 = vand.u32 %v925, 2147483648
        %v1095 = vor.u32 1.1754944e-38, %v1094
        %v1096 = vsel %vm1093, %v1095, %v1091
        %v1097 = vmul.f32 1.0, %v1096
        %v1098 = vrcp.pop %v926
        %v1099 = vmul.f32 %v926, %v1098
        %v1100 = vsub.f32 1.0, %v1099
        %v1101 = vmul.f32 %v1098, %v1100
        %v1102 = vadd.f32 %v1098, %v1101
        %vm1103 = vweird.f32 %v926
        %vm1104 = vweird.f32 %v1098
        %vm1105 = vmor %vm1103, %vm1104
        %v1106 = vsel %vm1105, %v1098, %v1102
        %v1107 = vand.u32 2147483647, %v926
        %vm1108 = vcmp.eq.f32.partialorder %v1107, 8.507059e+37
        %v1109 = vand.u32 %v926, 2147483648
        %v1110 = vor.u32 1.1754944e-38, %v1109
        %v1111 = vsel %vm1108, %v1110, %v1106
        %v1112 = vmul.f32 1.0, %v1111
        %v1113 = vrcp.pop %v927
        %v1114 = vmul.f32 %v927, %v1113
        %v1115 = vsub.f32 1.0, %v1114
        %v1116 = vmul.f32 %v1113, %v1115
        %v1117 = vadd.f32 %v1113, %v1116
        %vm1118 = vweird.f32 %v927
        %vm1119 = vweird.f32 %v1113
        %vm1120 = vmor %vm1118, %vm1119
        %v1121 = vsel %vm1120, %v1113, %v1117
        %v1122 = vand.u32 2147483647, %v927
        %vm1123 = vcmp.eq.f32.partialorder %v1122, 8.507059e+37
        %v1124 = vand.u32 %v927, 2147483648
        %v1125 = vor.u32 1.1754944e-38, %v1124
        %v1126 = vsel %vm1123, %v1125, %v1121
        %v1127 = vmul.f32 1.0, %v1126
        %v1128 = vrcp.pop %v928
        %v1129 = vmul.f32 %v928, %v1128
        %v1130 = vsub.f32 1.0, %v1129
        %v1131 = vmul.f32 %v1128, %v1130
        %v1132 = vadd.f32 %v1128, %v1131
        %vm1133 = vweird.f32 %v928
        %vm1134 = vweird.f32 %v1128
        %vm1135 = vmor %vm1133, %vm1134
        %v1136 = vsel %vm1135, %v1128, %v1132
        %v1137 = vand.u32 2147483647, %v928
        %vm1138 = vcmp.eq.f32.partialorder %v1137, 8.507059e+37
        %v1139 = vand.u32 %v928, 2147483648
        %v1140 = vor.u32 1.1754944e-38, %v1139
        %v1141 = vsel %vm1138, %v1140, %v1136
        %v1142 = vmul.f32 1.0, %v1141
        %v1143 = vrcp.pop %v929
        %v1144 = vmul.f32 %v929, %v1143
        %v1145 = vsub.f32 1.0, %v1144
        %v1146 = vmul.f32 %v1143, %v1145
        %v1147 = vadd.f32 %v1143, %v1146
        %vm1148 = vweird.f32 %v929
        %vm1149 = vweird.f32 %v1143
        %vm1150 = vmor %vm1148, %vm1149
        %v1151 = vsel %vm1150, %v1143, %v1147
        %v1152 = vand.u32 2147483647, %v929
        %vm1153 = vcmp.eq.f32.partialorder %v1152, 8.507059e+37
        %v1154 = vand.u32 %v929, 2147483648
        %v1155 = vor.u32 1.1754944e-38, %v1154
        %v1156 = vsel %vm1153, %v1155, %v1151
        %v1157 = vmul.f32 1.0, %v1156
        %v1158 = vrcp.pop %v930
        %v1159 = vmul.f32 %v930, %v1158
        %v1160 = vsub.f32 1.0, %v1159
        %v1161 = vmul.f32 %v1158, %v1160
        %v1162 = vadd.f32 %v1158, %v1161
        %vm1163 = vweird.f32 %v930
        %vm1164 = vweird.f32 %v1158
        %vm1165 = vmor %vm1163, %vm1164
        %v1166 = vsel %vm1165, %v1158, %v1162
        %v1167 = vand.u32 2147483647, %v930
        %vm1168 = vcmp.eq.f32.partialorder %v1167, 8.507059e+37
        %v1169 = vand.u32 %v930, 2147483648
        %v1170 = vor.u32 1.1754944e-38, %v1169
        %v1171 = vsel %vm1168, %v1170, %v1166
        %v1172 = vmul.f32 1.0, %v1171
        %v1173 = vrcp.pop %v931
        %v1174 = vmul.f32 %v931, %v1173
        %v1175 = vsub.f32 1.0, %v1174
        %v1176 = vmul.f32 %v1173, %v1175
        %v1177 = vadd.f32 %v1173, %v1176
        %vm1178 = vweird.f32 %v931
        %vm1179 = vweird.f32 %v1173
        %vm1180 = vmor %vm1178, %vm1179
        %v1181 = vsel %vm1180, %v1173, %v1177
        %v1182 = vand.u32 2147483647, %v931
        %vm1183 = vcmp.eq.f32.partialorder %v1182, 8.507059e+37
        %v1184 = vand.u32 %v931, 2147483648
        %v1185 = vor.u32 1.1754944e-38, %v1184
        %v1186 = vsel %vm1183, %v1185, %v1181
        %v1187 = vmul.f32 1.0, %v1186
        %v1188 = vrcp.pop %v932
        %v1189 = vmul.f32 %v932, %v1188
        %v1190 = vsub.f32 1.0, %v1189
        %v1191 = vmul.f32 %v1188, %v1190
        %v1192 = vadd.f32 %v1188, %v1191
        %vm1193 = vweird.f32 %v932
        %vm1194 = vweird.f32 %v1188
        %vm1195 = vmor %vm1193, %vm1194
        %v1196 = vsel %vm1195, %v1188, %v1192
        %v1197 = vand.u32 2147483647, %v932
        %vm1198 = vcmp.eq.f32.partialorder %v1197, 8.507059e+37
        %v1199 = vand.u32 %v932, 2147483648
        %v1200 = vor.u32 1.1754944e-38, %v1199
        %v1201 = vsel %vm1198, %v1200, %v1196
        %v1202 = vmul.f32 1.0, %v1201
        %v1203 = vrcp.pop %v933
        %v1204 = vmul.f32 %v933, %v1203
        %v1205 = vsub.f32 1.0, %v1204
        %v1206 = vmul.f32 %v1203, %v1205
        %v1207 = vadd.f32 %v1203, %v1206
        %vm1208 = vweird.f32 %v933
        %vm1209 = vweird.f32 %v1203
        %vm1210 = vmor %vm1208, %vm1209
        %v1211 = vsel %vm1210, %v1203, %v1207
        %v1212 = vand.u32 2147483647, %v933
        %vm1213 = vcmp.eq.f32.partialorder %v1212, 8.507059e+37
        %v1214 = vand.u32 %v933, 2147483648
        %v1215 = vor.u32 1.1754944e-38, %v1214
        %v1216 = vsel %vm1213, %v1215, %v1211
        %v1217 = vmul.f32 1.0, %v1216
        %v1218 = vrcp.pop %v934
        %v1219 = vmul.f32 %v934, %v1218
        %v1220 = vsub.f32 1.0, %v1219
        %v1221 = vmul.f32 %v1218, %v1220
        %v1222 = vadd.f32 %v1218, %v1221
        %vm1223 = vweird.f32 %v934
        %vm1224 = vweird.f32 %v1218
        %vm1225 = vmor %vm1223, %vm1224
        %v1226 = vsel %vm1225, %v1218, %v1222
        %v1227 = vand.u32 2147483647, %v934
        %vm1228 = vcmp.eq.f32.partialorder %v1227, 8.507059e+37
        %v1229 = vand.u32 %v934, 2147483648
        %v1230 = vor.u32 1.1754944e-38, %v1229
        %v1231 = vsel %vm1228, %v1230, %v1226
        %v1232 = vmul.f32 1.0, %v1231
        %v1233 = vrcp.pop %v935
        %v1234 = vmul.f32 %v935, %v1233
        %v1235 = vsub.f32 1.0, %v1234
        %v1236 = vmul.f32 %v1233, %v1235
        %v1237 = vadd.f32 %v1233, %v1236
        %vm1238 = vweird.f32 %v935
        %vm1239 = vweird.f32 %v1233
        %vm1240 = vmor %vm1238, %vm1239
        %v1241 = vsel %vm1240, %v1233, %v1237
        %v1242 = vand.u32 2147483647, %v935
        %vm1243 = vcmp.eq.f32.partialorder %v1242, 8.507059e+37
        %v1244 = vand.u32 %v935, 2147483648
        %v1245 = vor.u32 1.1754944e-38, %v1244
        %v1246 = vsel %vm1243, %v1245, %v1241
        %v1247 = vmul.f32 1.0, %v1246
        %v1248 = vrcp.pop %v936
        %v1249 = vmul.f32 %v936, %v1248
        %v1250 = vsub.f32 1.0, %v1249
        %v1251 = vmul.f32 %v1248, %v1250
        %v1252 = vadd.f32 %v1248, %v1251
        %vm1253 = vweird.f32 %v936
        %vm1254 = vweird.f32 %v1248
        %vm1255 = vmor %vm1253, %vm1254
        %v1256 = vsel %vm1255, %v1248, %v1252
        %v1257 = vand.u32 2147483647, %v936
        %vm1258 = vcmp.eq.f32.partialorder %v1257, 8.507059e+37
        %v1259 = vand.u32 %v936, 2147483648
        %v1260 = vor.u32 1.1754944e-38, %v1259
        %v1261 = vsel %vm1258, %v1260, %v1256
        %v1262 = vmul.f32 1.0, %v1261
        %v1263 = vrcp.pop %v937
        %v1264 = vmul.f32 %v937, %v1263
        %v1265 = vsub.f32 1.0, %v1264
        %v1266 = vmul.f32 %v1263, %v1265
        %v1267 = vadd.f32 %v1263, %v1266
        %vm1268 = vweird.f32 %v937
        %vm1269 = vweird.f32 %v1263
        %vm1270 = vmor %vm1268, %vm1269
        %v1271 = vsel %vm1270, %v1263, %v1267
        %v1272 = vand.u32 2147483647, %v937
        %vm1273 = vcmp.eq.f32.partialorder %v1272, 8.507059e+37
        %v1274 = vand.u32 %v937, 2147483648
        %v1275 = vor.u32 1.1754944e-38, %v1274
        %v1276 = vsel %vm1273, %v1275, %v1271
        %v1277 = vmul.f32 1.0, %v1276
        %v1278 = vrcp.pop %v938
        %v1279 = vmul.f32 %v938, %v1278
        %v1280 = vsub.f32 1.0, %v1279
        %v1281 = vmul.f32 %v1278, %v1280
        %v1282 = vadd.f32 %v1278, %v1281
        %vm1283 = vweird.f32 %v938
        %vm1284 = vweird.f32 %v1278
        %vm1285 = vmor %vm1283, %vm1284
        %v1286 = vsel %vm1285, %v1278, %v1282
        %v1287 = vand.u32 2147483647, %v938
        %vm1288 = vcmp.eq.f32.partialorder %v1287, 8.507059e+37
        %v1289 = vand.u32 %v938, 2147483648
        %v1290 = vor.u32 1.1754944e-38, %v1289
        %v1291 = vsel %vm1288, %v1290, %v1286
        %v1292 = vmul.f32 1.0, %v1291
        %v1293 = vrcp.pop %v939
        %v1294 = vmul.f32 %v939, %v1293
        %v1295 = vsub.f32 1.0, %v1294
        %v1296 = vmul.f32 %v1293, %v1295
        %v1297 = vadd.f32 %v1293, %v1296
        %vm1298 = vweird.f32 %v939
        %vm1299 = vweird.f32 %v1293
        %vm1300 = vmor %vm1298, %vm1299
        %v1301 = vsel %vm1300, %v1293, %v1297
        %v1302 = vand.u32 2147483647, %v939
        %vm1303 = vcmp.eq.f32.partialorder %v1302, 8.507059e+37
        %v1304 = vand.u32 %v939, 2147483648
        %v1305 = vor.u32 1.1754944e-38, %v1304
        %v1306 = vsel %vm1303, %v1305, %v1301
        %v1307 = vmul.f32 1.0, %v1306
        %v1308 = vrcp.pop %v940
        %v1309 = vmul.f32 %v940, %v1308
        %v1310 = vsub.f32 1.0, %v1309
        %v1311 = vmul.f32 %v1308, %v1310
        %v1312 = vadd.f32 %v1308, %v1311
        %vm1313 = vweird.f32 %v940
        %vm1314 = vweird.f32 %v1308
        %vm1315 = vmor %vm1313, %vm1314
        %v1316 = vsel %vm1315, %v1308, %v1312
        %v1317 = vand.u32 2147483647, %v940
        %vm1318 = vcmp.eq.f32.partialorder %v1317, 8.507059e+37
        %v1319 = vand.u32 %v940, 2147483648
        %v1320 = vor.u32 1.1754944e-38, %v1319
        %v1321 = vsel %vm1318, %v1320, %v1316
        %v1322 = vmul.f32 1.0, %v1321
        %v1323 = vrcp.pop %v941
        %v1324 = vmul.f32 %v941, %v1323
        %v1325 = vsub.f32 1.0, %v1324
        %v1326 = vmul.f32 %v1323, %v1325
        %v1327 = vadd.f32 %v1323, %v1326
        %vm1328 = vweird.f32 %v941
        %vm1329 = vweird.f32 %v1323
        %vm1330 = vmor %vm1328, %vm1329
        %v1331 = vsel %vm1330, %v1323, %v1327
        %v1332 = vand.u32 2147483647, %v941
        %vm1333 = vcmp.eq.f32.partialorder %v1332, 8.507059e+37
        %v1334 = vand.u32 %v941, 2147483648
        %v1335 = vor.u32 1.1754944e-38, %v1334
        %v1336 = vsel %vm1333, %v1335, %v1331
        %v1337 = vmul.f32 1.0, %v1336
        %v1338 = vrcp.pop %v942
        %v1339 = vmul.f32 %v942, %v1338
        %v1340 = vsub.f32 1.0, %v1339
        %v1341 = vmul.f32 %v1338, %v1340
        %v1342 = vadd.f32 %v1338, %v1341
        %vm1343 = vweird.f32 %v942
        %vm1344 = vweird.f32 %v1338
        %vm1345 = vmor %vm1343, %vm1344
        %v1346 = vsel %vm1345, %v1338, %v1342
        %v1347 = vand.u32 2147483647, %v942
        %vm1348 = vcmp.eq.f32.partialorder %v1347, 8.507059e+37
        %v1349 = vand.u32 %v942, 2147483648
        %v1350 = vor.u32 1.1754944e-38, %v1349
        %v1351 = vsel %vm1348, %v1350, %v1346
        %v1352 = vmul.f32 1.0, %v1351
        %v1353 = vrcp.pop %v943
        %v1354 = vmul.f32 %v943, %v1353
        %v1355 = vsub.f32 1.0, %v1354
        %v1356 = vmul.f32 %v1353, %v1355
        %v1357 = vadd.f32 %v1353, %v1356
        %vm1358 = vweird.f32 %v943
        %vm1359 = vweird.f32 %v1353
        %vm1360 = vmor %vm1358, %vm1359
        %v1361 = vsel %vm1360, %v1353, %v1357
        %v1362 = vand.u32 2147483647, %v943
        %vm1363 = vcmp.eq.f32.partialorder %v1362, 8.507059e+37
        %v1364 = vand.u32 %v943, 2147483648
        %v1365 = vor.u32 1.1754944e-38, %v1364
        %v1366 = vsel %vm1363, %v1365, %v1361
        %v1367 = vmul.f32 1.0, %v1366
        %v1368 = vrcp.pop %v944
        %v1369 = vmul.f32 %v944, %v1368
        %v1370 = vsub.f32 1.0, %v1369
        %v1371 = vmul.f32 %v1368, %v1370
        %v1372 = vadd.f32 %v1368, %v1371
        %vm1373 = vweird.f32 %v944
        %vm1374 = vweird.f32 %v1368
        %vm1375 = vmor %vm1373, %vm1374
        %v1376 = vsel %vm1375, %v1368, %v1372
        %v1377 = vand.u32 2147483647, %v944
        %vm1378 = vcmp.eq.f32.partialorder %v1377, 8.507059e+37
        %v1379 = vand.u32 %v944, 2147483648
        %v1380 = vor.u32 1.1754944e-38, %v1379
        %v1381 = vsel %vm1378, %v1380, %v1376
        %v1382 = vmul.f32 1.0, %v1381
        %v1383 = vrcp.pop %v945
        %v1384 = vmul.f32 %v945, %v1383
        %v1385 = vsub.f32 1.0, %v1384
        %v1386 = vmul.f32 %v1383, %v1385
        %v1387 = vadd.f32 %v1383, %v1386
        %vm1388 = vweird.f32 %v945
        %vm1389 = vweird.f32 %v1383
        %vm1390 = vmor %vm1388, %vm1389
        %v1391 = vsel %vm1390, %v1383, %v1387
        %v1392 = vand.u32 2147483647, %v945
        %vm1393 = vcmp.eq.f32.partialorder %v1392, 8.507059e+37
        %v1394 = vand.u32 %v945, 2147483648
        %v1395 = vor.u32 1.1754944e-38, %v1394
        %v1396 = vsel %vm1393, %v1395, %v1391
        %v1397 = vmul.f32 1.0, %v1396
        %v1398 = vrcp.pop %v946
        %v1399 = vmul.f32 %v946, %v1398
        %v1400 = vsub.f32 1.0, %v1399
        %v1401 = vmul.f32 %v1398, %v1400
        %v1402 = vadd.f32 %v1398, %v1401
        %vm1403 = vweird.f32 %v946
        %vm1404 = vweird.f32 %v1398
        %vm1405 = vmor %vm1403, %vm1404
        %v1406 = vsel %vm1405, %v1398, %v1402
        %v1407 = vand.u32 2147483647, %v946
        %vm1408 = vcmp.eq.f32.partialorder %v1407, 8.507059e+37
        %v1409 = vand.u32 %v946, 2147483648
        %v1410 = vor.u32 1.1754944e-38, %v1409
        %v1411 = vsel %vm1408, %v1410, %v1406
        %v1412 = vmul.f32 1.0, %v1411
        %v1413 = vrcp.pop %v947
        %v1414 = vmul.f32 %v947, %v1413
        %v1415 = vsub.f32 1.0, %v1414
        %v1416 = vmul.f32 %v1413, %v1415
        %v1417 = vadd.f32 %v1413, %v1416
        %vm1418 = vweird.f32 %v947
        %vm1419 = vweird.f32 %v1413
        %vm1420 = vmor %vm1418, %vm1419
        %v1421 = vsel %vm1420, %v1413, %v1417
        %v1422 = vand.u32 2147483647, %v947
        %vm1423 = vcmp.eq.f32.partialorder %v1422, 8.507059e+37
        %v1424 = vand.u32 %v947, 2147483648
        %v1425 = vor.u32 1.1754944e-38, %v1424
        %v1426 = vsel %vm1423, %v1425, %v1421
        %v1427 = vmul.f32 1.0, %v1426
        %v1428 = vmul.f32 %v788, %v962
        %v1429 = vmul.f32 %v789, %v977
        %v1430 = vmul.f32 %v790, %v992
        %v1431 = vmul.f32 %v791, %v1007
        %v1432 = vmul.f32 %v792, %v1022
        %v1433 = vmul.f32 %v793, %v1037
        %v1434 = vmul.f32 %v794, %v1052
        %v1435 = vmul.f32 %v795, %v1067
        %v1436 = vmul.f32 %v796, %v1082
        %v1437 = vmul.f32 %v797, %v1097
        %v1438 = vmul.f32 %v798, %v1112
        %v1439 = vmul.f32 %v799, %v1127
        %v1440 = vmul.f32 %v800, %v1142
        %v1441 = vmul.f32 %v801, %v1157
        %v1442 = vmul.f32 %v802, %v1172
        %v1443 = vmul.f32 %v803, %v1187
        %v1444 = vmul.f32 %v804, %v1202
        %v1445 = vmul.f32 %v805, %v1217
        %v1446 = vmul.f32 %v806, %v1232
        %v1447 = vmul.f32 %v807, %v1247
        %v1448 = vmul.f32 %v808, %v1262
        %v1449 = vmul.f32 %v809, %v1277
        %v1450 = vmul.f32 %v810, %v1292
        %v1451 = vmul.f32 %v811, %v1307
        %v1452 = vmul.f32 %v812, %v1322
        %v1453 = vmul.f32 %v813, %v1337
        %v1454 = vmul.f32 %v814, %v1352
        %v1455 = vmul.f32 %v815, %v1367
        %v1456 = vmul.f32 %v816, %v1382
        %v1457 = vmul.f32 %v817, %v1397
        %v1458 = vmul.f32 %v818, %v1412
        %v1459 = vmul.f32 %v819, %v1427
        %v1460 = vpack.c.bf16 %v1428, %v1428
        %v1461 = vpack.c.bf16 %v1429, %v1429
        %v1462 = vpack.c.bf16 %v1430, %v1430
        %v1463 = vpack.c.bf16 %v1431, %v1431
        %v1464 = vpack.c.bf16 %v1432, %v1432
        %v1465 = vpack.c.bf16 %v1433, %v1433
        %v1466 = vpack.c.bf16 %v1434, %v1434
        %v1467 = vpack.c.bf16 %v1435, %v1435
        %v1468 = vpack.c.bf16 %v1436, %v1436
        %v1469 = vpack.c.bf16 %v1437, %v1437
        %v1470 = vpack.c.bf16 %v1438, %v1438
        %v1471 = vpack.c.bf16 %v1439, %v1439
        %v1472 = vpack.c.bf16 %v1440, %v1440
        %v1473 = vpack.c.bf16 %v1441, %v1441
        %v1474 = vpack.c.bf16 %v1442, %v1442
        %v1475 = vpack.c.bf16 %v1443, %v1443
        %v1476 = vpack.c.bf16 %v1444, %v1444
        %v1477 = vpack.c.bf16 %v1445, %v1445
        %v1478 = vpack.c.bf16 %v1446, %v1446
        %v1479 = vpack.c.bf16 %v1447, %v1447
        %v1480 = vpack.c.bf16 %v1448, %v1448
        %v1481 = vpack.c.bf16 %v1449, %v1449
        %v1482 = vpack.c.bf16 %v1450, %v1450
        %v1483 = vpack.c.bf16 %v1451, %v1451
        %v1484 = vpack.c.bf16 %v1452, %v1452
        %v1485 = vpack.c.bf16 %v1453, %v1453
        %v1486 = vpack.c.bf16 %v1454, %v1454
        %v1487 = vpack.c.bf16 %v1455, %v1455
        %v1488 = vpack.c.bf16 %v1456, %v1456
        %v1489 = vpack.c.bf16 %v1457, %v1457
        %v1490 = vpack.c.bf16 %v1458, %v1458
        %v1491 = vpack.c.bf16 %v1459, %v1459
        %1492 = vst [vmem:[%s298] sm:$0xf] %v1460
        %1493 = vst [vmem:[%s298 + $0x4] sm:$0xf] %v1461
        %1494 = vst [vmem:[%s298 + $0x8] sm:$0xf] %v1462
        %1495 = vst [vmem:[%s298 + $0xc] sm:$0xf] %v1463
        %1496 = vst [vmem:[%s298 + $0x10] sm:$0xf] %v1464
        %1497 = vst [vmem:[%s298 + $0x14] sm:$0xf] %v1465
        %1498 = vst [vmem:[%s298 + $0x18] sm:$0xf] %v1466
        %1499 = vst [vmem:[%s298 + $0x1c] sm:$0xf] %v1467
        %1500 = vst [vmem:[%s298 + $0x20] sm:$0xf] %v1468
        %1501 = vst [vmem:[%s298 + $0x24] sm:$0xf] %v1469
        %1502 = vst [vmem:[%s298 + $0x28] sm:$0xf] %v1470
        %1503 = vst [vmem:[%s298 + $0x2c] sm:$0xf] %v1471
        %1504 = vst [vmem:[%s298 + $0x30] sm:$0xf] %v1472
        %1505 = vst [vmem:[%s298 + $0x34] sm:$0xf] %v1473
        %1506 = vst [vmem:[%s298 + $0x38] sm:$0xf] %v1474
        %1507 = vst [vmem:[%s298 + $0x3c] sm:$0xf] %v1475
        %1508 = vst [vmem:[%s298 + $0x40] sm:$0xf] %v1476
        %1509 = vst [vmem:[%s298 + $0x44] sm:$0xf] %v1477
        %1510 = vst [vmem:[%s298 + $0x48] sm:$0xf] %v1478
        %1511 = vst [vmem:[%s298 + $0x4c] sm:$0xf] %v1479
        %1512 = vst [vmem:[%s298 + $0x50] sm:$0xf] %v1480
        %1513 = vst [vmem:[%s298 + $0x54] sm:$0xf] %v1481
        %1514 = vst [vmem:[%s298 + $0x58] sm:$0xf] %v1482
        %1515 = vst [vmem:[%s298 + $0x5c] sm:$0xf] %v1483
        %1516 = vst [vmem:[%s298 + $0x60] sm:$0xf] %v1484
        %1517 = vst [vmem:[%s298 + $0x64] sm:$0xf] %v1485
        %1518 = vst [vmem:[%s298 + $0x68] sm:$0xf] %v1486
        %1519 = vst [vmem:[%s298 + $0x6c] sm:$0xf] %v1487
        %1520 = vst [vmem:[%s298 + $0x70] sm:$0xf] %v1488
        %1521 = vst [vmem:[%s298 + $0x74] sm:$0xf] %v1489
        %1522 = vst [vmem:[%s298 + $0x78] sm:$0xf] %v1490
        %1523 = vst [vmem:[%s298 + $0x7c] sm:$0xf] %v1491
      $region44: #{conv_forward.1} parent=35 // pred_fallthru
        _
      %s1524 = smul.u32 32, %s20
      %p1525 = scmp.lt.s32.totalorder %s1524, 63
      %s1526 = scalar_select %p1525, %s1524, 63
      %p1527 = scmp.lt.s32.totalorder %s21, 0
      %s1528 = scalar_select %p1527, %s21, 0
      %s1529 = sadd.s32 %s1528, %s1526
      %s1530 = smul.addr %s1529, 4
      %s1531 = scalar_lea.vmem %s4, %s1530
      // Predicated region
      $region45: #{conv_forward.1} parent=35 // pred_check
        %p1532 = pneg %p162
      $region46: #{conv_forward.1} parent=35 // pred_check_branch
        %1534 = sbr.rel (%p1532) target = $region48
      $region47: #{conv_forward.1} parent=35 // pred_region
        %s1535 = smul.u32 32, %s20
      $region48: #{conv_forward.1} parent=35 // pred_fallthru
        _
    $region36: #{conv_forward.1} parent=5 // pred_fallthru
      _
    %p1536 = scmp.le.s32.totalorder 2, %s10
    // Predicated region
    $region49: #{conv_forward.1} parent=5 // pred_check
      %p1537 = pneg %p1536
    $region50: #{conv_forward.1} parent=5 // pred_check_branch
      %1539 = sbr.rel (%p1537) target = $region52
    $region51: #{conv_forward.1} parent=5 // pred_region
      %s1540 = ssub.s32 %s10, 2
      // Predicated region
      $region53: #{conv_forward.1} parent=51 // pred_check
        %p1541 = pneg %p168
      $region54: #{conv_forward.1} parent=51 // pred_check_branch
        %1543 = sbr.rel (%p1541) target = $region56
      $region55: #{conv_forward.1} parent=51 // pred_region
        %s1544 = smul.u32 32, %s23
        %p1545 = scmp.lt.s32.totalorder %s1544, 63
        %s1546 = scalar_select %p1545, %s1544, 63
        %p1547 = scmp.lt.s32.totalorder %s24, 0
        %s1548 = scalar_select %p1547, %s24, 0
        %s1549 = sadd.s32 %s1548, %s1546
        %s1550 = smul.addr %s1549, 4
        %s1551 = scalar_lea.vmem %s4, %s1550
      $region56: #{conv_forward.1} parent=51 // pred_fallthru
        _
    $region52: #{conv_forward.1} parent=5 // pred_fallthru
      _
  $region6: #{conv_forward.1} parent=0 // loop_footer
    %s14 = sadd.s32 1, %s10
  $region7: #{conv_forward.1} parent=0 // loop_footer_branch
    %9 = sbr.rel target = $region3
  $region8: #{conv_forward.1} parent=0 // loop_exit
    _

</llo_original>
